<compile_context>
chip_gen: v7x
topology: tpu7x:2x2x1
jax: 0.10.0
libtpu: 0.0.40
codegen_flags: <defaults>
</compile_context>

<pallas_src>
import functools
import inspect
import math

import jax
import jax.numpy as jnp
import numpy as np
from jax.experimental import pallas as pl
from jax.experimental.pallas import tpu as pltpu


def _single_buffer_kwargs():
    """pipeline_mode=pl.Buffered(1) for grid-invariant blocks, if supported."""
    try:
        if (hasattr(pl, "Buffered")
                and "pipeline_mode" in inspect.signature(pl.BlockSpec).parameters):
            return {"pipeline_mode": pl.Buffered(1)}
    except (TypeError, ValueError):
        pass
    return {}


_SINGLE_BUFFER_KW = _single_buffer_kwargs()


def _split_heads(x, num_heads, head_dim, dtype):
    """(S, D) -> (H, S, hd) as a value: static lane slices + major-axis stack.

    Static slices + one stacked value keep the scratch/output writes as single
    unmasked full stores (no per-head masked-store loop)."""
    return jnp.stack(
        [x[:, h * head_dim:(h + 1) * head_dim] for h in range(num_heads)],
        axis=0).astype(dtype)


def _mha_kernel(xq_ref, xk_ref, xv_ref,
                wq_ref, bq_ref, wk_ref, bk_ref, wv_ref, bv_ref,
                wo_ref, bo_ref, out_ref,
                k_hs, v_hs,
                *, num_heads, head_dim):
    qi = pl.program_id(1)
    inv_scale = 1.0 / math.sqrt(head_dim)

    # ---- K/V projections: once per batch element, cached across q-tiles ----
    # Relies on qi == 0 running first for each batch element (q-tile grid axis
    # is "arbitrary", i.e. iterated in order on each core).
    @pl.when(qi == 0)
    def _():
        k_proj = (jnp.dot(xk_ref[0], wk_ref[...],
                          preferred_element_type=jnp.float32) + bk_ref[...])
        v_proj = (jnp.dot(xv_ref[0], wv_ref[...],
                          preferred_element_type=jnp.float32) + bv_ref[...])
        k_hs[...] = _split_heads(k_proj, num_heads, head_dim, jnp.bfloat16)
        v_hs[...] = _split_heads(v_proj, num_heads, head_dim, jnp.bfloat16)

    # ---- Q projection for this query tile (scale folded into the small tile)
    q_proj = (jnp.dot(xq_ref[0], wq_ref[...],
                      preferred_element_type=jnp.float32) + bq_ref[...])
    q3 = _split_heads(q_proj * inv_scale, num_heads, head_dim, jnp.bfloat16)

    k3 = k_hs[...]                      # (H, Skv, hd) bf16
    v3 = v_hs[...]                      # (H, Skv, hd) bf16

    # ---- head-batched attention: scores, softmax (f32), PV ----
    s = jnp.einsum("hqd,hkd->hqk", q3, k3,
                   preferred_element_type=jnp.float32)          # (H, tq, Skv)
    # TODO(synk): attention mask would be applied to `s` here (mask=None path).
    s_max = jnp.max(s, axis=-1, keepdims=True)
    p = jnp.exp(s - s_max)                                      # unnormalized
    l = jnp.sum(p, axis=-1, keepdims=True)                      # (H, tq, 1)
    # TODO(synk): train-mode dropout on the probs not implemented (eval path).

    o3 = jnp.einsum("hqk,hkd->hqd", p.astype(jnp.bfloat16), v3,
                    preferred_element_type=jnp.float32)         # (H, tq, hd)
    # Softmax normalization moved after PV: H*tq*hd multiplies, exact recip.
    o3 = (o3 * pl.reciprocal(l, approx=False)).astype(jnp.bfloat16)

    # Head concat as a value, fed straight into the full-D output projection.
    o_cat = jnp.concatenate([o3[h] for h in range(num_heads)], axis=-1)
    out = (jnp.dot(o_cat, wo_ref[...],
                   preferred_element_type=jnp.float32) + bo_ref[...])
    out_ref[0] = out.astype(out_ref.dtype)


def prepare_params(params, dtype=jnp.bfloat16):
    """One-time weight prep, hoisted out of the per-call path.

    PyTorch nn.Linear stores weights as [out, in]; the kernel wants [in, out]
    bf16 MXU operands and (1, D) f32 bias rows."""
    D = params["wq"].shape[0]
    f32 = jnp.float32
    return {
        "wq": jnp.asarray(params["wq"]).T.astype(dtype),
        "wk": jnp.asarray(params["wk"]).T.astype(dtype),
        "wv": jnp.asarray(params["wv"]).T.astype(dtype),
        "wo": jnp.asarray(params["wo"]).T.astype(dtype),
        "bq": jnp.asarray(params["bq"]).reshape(1, D).astype(f32),
        "bk": jnp.asarray(params["bk"]).reshape(1, D).astype(f32),
        "bv": jnp.asarray(params["bv"]).reshape(1, D).astype(f32),
        "bo": jnp.asarray(params["bo"]).reshape(1, D).astype(f32),
    }


def _vmem_limit_bytes(D, skv, q_tile, num_heads, head_dim, out_itemsize):
    """Scoped-VMEM limit from the actual working set (defaults 16/32 MiB are
    too small for realistic BERT shapes)."""
    bf16, f32, lane = 2, 4, 128
    hd_pad = max(head_dim, lane)
    skv_pad = max(skv, lane)
    weights = 4 * D * D * bf16                              # single-buffered
    biases = 4 * 2 * D * f32
    q_in = 2 * q_tile * D * bf16                            # double-buffered
    kv_in = 2 * 2 * skv * D * bf16
    out_blk = 2 * q_tile * D * out_itemsize
    kv_scratch = 2 * num_heads * skv * hd_pad * bf16        # lane-padded hd
    softmax_tmp = 2 * num_heads * q_tile * skv_pad * f32    # scores + probs
    proj_tmp = (q_tile + 2 * skv) * D * f32
    head_tmp = 3 * num_heads * q_tile * hd_pad * f32
    est = (weights + biases + q_in + kv_in + out_blk + kv_scratch
           + softmax_tmp + proj_tmp + head_tmp)
    return int(min(128 * 1024 * 1024, max(32 * 1024 * 1024, 2 * est)))


def multi_head_attention(q, k, v, prepared_params, *, num_heads, q_tile=None):
    """q: [B, Sq, D]; k, v: [B, Skv, D]. prepared_params from prepare_params."""
    B, Sq, D = q.shape
    _, Skv, _ = k.shape
    if D % num_heads != 0:
        raise Exception("dim should be divided by h")
    head_dim = D // num_heads

    if q_tile is None:
        # 256 fills the 256-wide MXU M dim on v6e/v7x; fall back for short Sq.
        q_tile = Sq
        for cand in (256, 128, 64, 32, 16, 8):
            if Sq % cand == 0:
                q_tile = cand
                break
    assert Sq % q_tile == 0, "query length must be divisible by the query tile"
    nq = Sq // q_tile

    pp = prepared_params
    bf16 = jnp.bfloat16

    q_spec = pl.BlockSpec((1, q_tile, D), lambda b, i: (b, i, 0))
    kv_spec = pl.BlockSpec((1, Skv, D), lambda b, i: (b, 0, 0))
    # Constant weight/bias blocks: index is always (0, 0) -> single-buffer.
    w_spec = pl.BlockSpec((D, D), lambda b, i: (0, 0), **_SINGLE_BUFFER_KW)
    b_spec = pl.BlockSpec((1, D), lambda b, i: (0, 0), **_SINGLE_BUFFER_KW)
    out_spec = pl.BlockSpec((1, q_tile, D), lambda b, i: (b, i, 0))

    kernel = functools.partial(_mha_kernel,
                               num_heads=num_heads, head_dim=head_dim)

    return pl.pallas_call(
        kernel,
        out_shape=jax.ShapeDtypeStruct((B, Sq, D), q.dtype),
        grid_spec=pltpu.PrefetchScalarGridSpec(
            num_scalar_prefetch=0,
            grid=(B, nq),
            in_specs=[q_spec, kv_spec, kv_spec,
                      w_spec, b_spec, w_spec, b_spec, w_spec, b_spec,
                      w_spec, b_spec],
            out_specs=out_spec,
            scratch_shapes=[
                pltpu.VMEM((num_heads, Skv, head_dim), bf16),   # K heads
                pltpu.VMEM((num_heads, Skv, head_dim), bf16),   # V heads
            ]),
        compiler_params=pltpu.CompilerParams(
            # Batch axis across cores; q-tile axis MUST stay "arbitrary"
            # because of the per-batch K/V scratch carry.
            dimension_semantics=("parallel", "arbitrary"),
            vmem_limit_bytes=_vmem_limit_bytes(
                D, Skv, q_tile, num_heads, head_dim, q.dtype.itemsize)),
    )(q.astype(bf16), k.astype(bf16), v.astype(bf16),
      pp["wq"], pp["bq"], pp["wk"], pp["bk"], pp["wv"], pp["bv"],
      pp["wo"], pp["bo"])


def _reference(q, k, v, params, *, num_heads, matmul_dtype=jnp.float32):
    """Plain-JAX replica of the PyTorch forward (mask=None, eval dropout).

    matmul_dtype controls matmul operand precision so the kernel (bf16 MXU
    operands, f32 accumulation) can be checked against a precision-matched
    reference (tight tol) and the full-f32 PyTorch semantics (loose tol)."""
    B, Sq, D = q.shape
    hd = D // num_heads
    md = matmul_dtype

    def lin(x, w, b):
        y = jnp.einsum("bsd,df->bsf", x.astype(md), w.T.astype(md),
                       preferred_element_type=jnp.float32)
        return y + b

    def split(x):
        return x.reshape(B, -1, num_heads, hd).transpose(0, 2, 1, 3)

    qh = split(lin(q, params["wq"], params["bq"]))
    kh = split(lin(k, params["wk"], params["bk"]))
    vh = split(lin(v, params["wv"], params["bv"]))

    s = jnp.einsum("bhqd,bhkd->bhqk", qh.astype(md), kh.astype(md),
                   preferred_element_type=jnp.float32) / math.sqrt(hd)
    p = jax.nn.softmax(s, axis=-1)
    o = jnp.einsum("bhqk,bhkd->bhqd", p.astype(md), vh.astype(md),
                   preferred_element_type=jnp.float32)
    o = o.transpose(0, 2, 1, 3).reshape(B, Sq, D)
    return lin(o, params["wo"], params["bo"])


if __name__ == "__main__":
    B, S, D, H = 2, 16, 32, 4     # small shapes; q_tile=8 -> 2 query tiles

    key = jax.random.PRNGKey(0)
    keys = jax.random.split(key, 12)
    scale = 1.0 / math.sqrt(D)

    params = {
        "wq": jax.random.normal(keys[0], (D, D), jnp.float32) * scale,
        "bq": jax.random.normal(keys[1], (D,), jnp.float32) * scale,
        "wk": jax.random.normal(keys[2], (D, D), jnp.float32) * scale,
        "bk": jax.random.normal(keys[3], (D,), jnp.float32) * scale,
        "wv": jax.random.normal(keys[4], (D, D), jnp.float32) * scale,
        "bv": jax.random.normal(keys[5], (D,), jnp.float32) * scale,
        "wo": jax.random.normal(keys[6], (D, D), jnp.float32) * scale,
        "bo": jax.random.normal(keys[7], (D,), jnp.float32) * scale,
    }

    q = jax.random.normal(keys[8], (B, S, D), jnp.float32)
    k = jax.random.normal(keys[9], (B, S, D), jnp.float32)
    v = jax.random.normal(keys[10], (B, S, D), jnp.float32)

    prepared = prepare_params(params)   # one-time weight prep (hoisted)
    out = multi_head_attention(q, k, v, prepared, num_heads=H, q_tile=8)
    out = jax.block_until_ready(out)
    out_np = np.asarray(out)

    # Tight check vs a precision-matched (bf16 matmul operands) reference.
    ref_bf16 = jax.block_until_ready(
        _reference(q, k, v, params, num_heads=H, matmul_dtype=jnp.bfloat16))
    np.testing.assert_allclose(out_np, np.asarray(ref_bf16), rtol=2e-2, atol=2e-2)

    # Sanity check vs the full-f32 PyTorch semantics (loose tolerance covers
    # the bf16 MXU operand rounding).
    ref_f32 = jax.block_until_ready(
        _reference(q, k, v, params, num_heads=H, matmul_dtype=jnp.float32))
    np.testing.assert_allclose(out_np, np.asarray(ref_f32), rtol=1.5e-1, atol=1.5e-1)

    print("KERNEL_OK")
</pallas_src>

<mosaic_0001>
module attributes {stable_mosaic.version = 11 : i64} {
  func.func @_mha_kernel(%arg0: i32, %arg1: i32, %arg2: memref<1x8x32xbf16, #tpu.memory_space<vmem>>, %arg3: memref<1x16x32xbf16, #tpu.memory_space<vmem>>, %arg4: memref<1x16x32xbf16, #tpu.memory_space<vmem>>, %arg5: memref<32x32xbf16, #tpu.memory_space<vmem>>, %arg6: memref<1x32xf32, #tpu.memory_space<vmem>>, %arg7: memref<32x32xbf16, #tpu.memory_space<vmem>>, %arg8: memref<1x32xf32, #tpu.memory_space<vmem>>, %arg9: memref<32x32xbf16, #tpu.memory_space<vmem>>, %arg10: memref<1x32xf32, #tpu.memory_space<vmem>>, %arg11: memref<32x32xbf16, #tpu.memory_space<vmem>>, %arg12: memref<1x32xf32, #tpu.memory_space<vmem>>, %arg13: memref<1x8x32xf32, #tpu.memory_space<vmem>>, %arg14: memref<4x16x8xbf16, #tpu.memory_space<vmem>>, %arg15: memref<4x16x8xbf16, #tpu.memory_space<vmem>>) attributes {dimension_semantics = [#tpu.dimension_semantics<parallel>, #tpu.dimension_semantics<arbitrary>], iteration_bounds = array<i64: 2, 2>, scalar_prefetch = 0 : i64, scratch_operands = 2 : i64, tpu.core_type = #tpu.core_type<tc>, window_params = [{transform_indices = @transform_0, window_bounds = array<i64: 1, 8, 32>}, {transform_indices = @transform_1, window_bounds = array<i64: 1, 16, 32>}, {transform_indices = @transform_2, window_bounds = array<i64: 1, 16, 32>}, {pipeline_mode = #tpu.pipeline_mode<synchronous>, transform_indices = @transform_3, window_bounds = array<i64: 32, 32>}, {pipeline_mode = #tpu.pipeline_mode<synchronous>, transform_indices = @transform_4, window_bounds = array<i64: 1, 32>}, {pipeline_mode = #tpu.pipeline_mode<synchronous>, transform_indices = @transform_5, window_bounds = array<i64: 32, 32>}, {pipeline_mode = #tpu.pipeline_mode<synchronous>, transform_indices = @transform_6, window_bounds = array<i64: 1, 32>}, {pipeline_mode = #tpu.pipeline_mode<synchronous>, transform_indices = @transform_7, window_bounds = array<i64: 32, 32>}, {pipeline_mode = #tpu.pipeline_mode<synchronous>, transform_indices = @transform_8, window_bounds = array<i64: 1, 32>}, {pipeline_mode = #tpu.pipeline_mode<synchronous>, transform_indices = @transform_9, window_bounds = array<i64: 32, 32>}, {pipeline_mode = #tpu.pipeline_mode<synchronous>, transform_indices = @transform_10, window_bounds = array<i64: 1, 32>}, {transform_indices = @transform_11, window_bounds = array<i64: 1, 8, 32>}]} {
    %c0_i32 = arith.constant 0 : i32
    %0 = arith.cmpi eq, %arg1, %c0_i32 : i32
    %1 = arith.extui %0 : i1 to i32
    %c0_i32_0 = arith.constant 0 : i32
    %2 = arith.cmpi ne, %1, %c0_i32_0 : i32
    scf.if %2 {
      %c0_26 = arith.constant 0 : index
      %c0_27 = arith.constant 0 : index
      %c0_28 = arith.constant 0 : index
      %55 = vector.load %arg3[%c0_26, %c0_27, %c0_28] : memref<1x16x32xbf16, #tpu.memory_space<vmem>>, vector<1x16x32xbf16>
      %56 = vector.shape_cast %55 : vector<1x16x32xbf16> to vector<16x32xbf16>
      %c0_29 = arith.constant 0 : index
      %c0_30 = arith.constant 0 : index
      %57 = vector.load %arg7[%c0_29, %c0_30] : memref<32x32xbf16, #tpu.memory_space<vmem>>, vector<32x32xbf16>
      %cst_31 = arith.constant dense<0.000000e+00> : vector<16x32xf32>
      %58 = tpu.matmul %56, %57, %cst_31 {dimension_numbers = #tpu.dot_dimension_numbers<[1], [0], [0], [1], [0, 0, 1, 1], [], []>} : vector<16x32xbf16>, vector<32x32xbf16>, vector<16x32xf32> -> vector<16x32xf32>
      %c0_32 = arith.constant 0 : index
      %c0_33 = arith.constant 0 : index
      %59 = vector.load %arg8[%c0_32, %c0_33] : memref<1x32xf32, #tpu.memory_space<vmem>>, vector<1x32xf32>
      %60 = vector.broadcast %59 : vector<1x32xf32> to vector<16x32xf32>
      %61 = arith.addf %58, %60 : vector<16x32xf32>
      %c0_34 = arith.constant 0 : index
      %c0_35 = arith.constant 0 : index
      %c0_36 = arith.constant 0 : index
      %62 = vector.load %arg4[%c0_34, %c0_35, %c0_36] : memref<1x16x32xbf16, #tpu.memory_space<vmem>>, vector<1x16x32xbf16>
      %63 = vector.shape_cast %62 : vector<1x16x32xbf16> to vector<16x32xbf16>
      %c0_37 = arith.constant 0 : index
      %c0_38 = arith.constant 0 : index
      %64 = vector.load %arg9[%c0_37, %c0_38] : memref<32x32xbf16, #tpu.memory_space<vmem>>, vector<32x32xbf16>
      %cst_39 = arith.constant dense<0.000000e+00> : vector<16x32xf32>
      %65 = tpu.matmul %63, %64, %cst_39 {dimension_numbers = #tpu.dot_dimension_numbers<[1], [0], [0], [1], [0, 0, 1, 1], [], []>} : vector<16x32xbf16>, vector<32x32xbf16>, vector<16x32xf32> -> vector<16x32xf32>
      %c0_40 = arith.constant 0 : index
      %c0_41 = arith.constant 0 : index
      %66 = vector.load %arg10[%c0_40, %c0_41] : memref<1x32xf32, #tpu.memory_space<vmem>>, vector<1x32xf32>
      %67 = vector.broadcast %66 : vector<1x32xf32> to vector<16x32xf32>
      %68 = arith.addf %65, %67 : vector<16x32xf32>
      %69 = vector.extract_strided_slice %61 {offsets = [0, 0], sizes = [16, 8], strides = [1, 1]} : vector<16x32xf32> to vector<16x8xf32>
      %70 = vector.extract_strided_slice %61 {offsets = [0, 8], sizes = [16, 8], strides = [1, 1]} : vector<16x32xf32> to vector<16x8xf32>
      %71 = vector.extract_strided_slice %61 {offsets = [0, 16], sizes = [16, 8], strides = [1, 1]} : vector<16x32xf32> to vector<16x8xf32>
      %72 = vector.extract_strided_slice %61 {offsets = [0, 24], sizes = [16, 8], strides = [1, 1]} : vector<16x32xf32> to vector<16x8xf32>
      %73 = vector.shape_cast %69 : vector<16x8xf32> to vector<1x16x8xf32>
      %74 = vector.shape_cast %70 : vector<16x8xf32> to vector<1x16x8xf32>
      %75 = vector.shape_cast %71 : vector<16x8xf32> to vector<1x16x8xf32>
      %76 = vector.shape_cast %72 : vector<16x8xf32> to vector<1x16x8xf32>
      %77 = tpu.concatenate %73, %74, %75, %76 in 0 : vector<1x16x8xf32>, vector<1x16x8xf32>, vector<1x16x8xf32>, vector<1x16x8xf32> -> vector<4x16x8xf32>
      %78 = arith.truncf %77 : vector<4x16x8xf32> to vector<4x16x8xbf16>
      %c0_42 = arith.constant 0 : index
      %c0_43 = arith.constant 0 : index
      %c0_44 = arith.constant 0 : index
      %79 = vector.load %arg14[%c0_42, %c0_43, %c0_44] : memref<4x16x8xbf16, #tpu.memory_space<vmem>>, vector<4x16x8xbf16>
      tpu.vector_store %arg14[%c0_42, %c0_43, %c0_44], %78 {strides = array<i32>} : memref<4x16x8xbf16, #tpu.memory_space<vmem>>, vector<4x16x8xbf16>,
      %80 = vector.extract_strided_slice %68 {offsets = [0, 0], sizes = [16, 8], strides = [1, 1]} : vector<16x32xf32> to vector<16x8xf32>
      %81 = vector.extract_strided_slice %68 {offsets = [0, 8], sizes = [16, 8], strides = [1, 1]} : vector<16x32xf32> to vector<16x8xf32>
      %82 = vector.extract_strided_slice %68 {offsets = [0, 16], sizes = [16, 8], strides = [1, 1]} : vector<16x32xf32> to vector<16x8xf32>
      %83 = vector.extract_strided_slice %68 {offsets = [0, 24], sizes = [16, 8], strides = [1, 1]} : vector<16x32xf32> to vector<16x8xf32>
      %84 = vector.shape_cast %80 : vector<16x8xf32> to vector<1x16x8xf32>
      %85 = vector.shape_cast %81 : vector<16x8xf32> to vector<1x16x8xf32>
      %86 = vector.shape_cast %82 : vector<16x8xf32> to vector<1x16x8xf32>
      %87 = vector.shape_cast %83 : vector<16x8xf32> to vector<1x16x8xf32>
      %88 = tpu.concatenate %84, %85, %86, %87 in 0 : vector<1x16x8xf32>, vector<1x16x8xf32>, vector<1x16x8xf32>, vector<1x16x8xf32> -> vector<4x16x8xf32>
      %89 = arith.truncf %88 : vector<4x16x8xf32> to vector<4x16x8xbf16>
      %c0_45 = arith.constant 0 : index
      %c0_46 = arith.constant 0 : index
      %c0_47 = arith.constant 0 : index
      %90 = vector.load %arg15[%c0_45, %c0_46, %c0_47] : memref<4x16x8xbf16, #tpu.memory_space<vmem>>, vector<4x16x8xbf16>
      tpu.vector_store %arg15[%c0_45, %c0_46, %c0_47], %89 {strides = array<i32>} : memref<4x16x8xbf16, #tpu.memory_space<vmem>>, vector<4x16x8xbf16>,
    } else {
    }
    %c0 = arith.constant 0 : index
    %c0_1 = arith.constant 0 : index
    %c0_2 = arith.constant 0 : index
    %3 = vector.load %arg2[%c0, %c0_1, %c0_2] : memref<1x8x32xbf16, #tpu.memory_space<vmem>>, vector<1x8x32xbf16>
    %4 = vector.shape_cast %3 : vector<1x8x32xbf16> to vector<8x32xbf16>
    %c0_3 = arith.constant 0 : index
    %c0_4 = arith.constant 0 : index
    %5 = vector.load %arg5[%c0_3, %c0_4] : memref<32x32xbf16, #tpu.memory_space<vmem>>, vector<32x32xbf16>
    %cst = arith.constant dense<0.000000e+00> : vector<8x32xf32>
    %6 = tpu.matmul %4, %5, %cst {dimension_numbers = #tpu.dot_dimension_numbers<[1], [0], [0], [1], [0, 0, 1, 1], [], []>} : vector<8x32xbf16>, vector<32x32xbf16>, vector<8x32xf32> -> vector<8x32xf32>
    %c0_5 = arith.constant 0 : index
    %c0_6 = arith.constant 0 : index
    %7 = vector.load %arg6[%c0_5, %c0_6] : memref<1x32xf32, #tpu.memory_space<vmem>>, vector<1x32xf32>
    %8 = vector.broadcast %7 : vector<1x32xf32> to vector<8x32xf32>
    %9 = arith.addf %6, %8 : vector<8x32xf32>
    %cst_7 = arith.constant 0.353553385 : f32
    %10 = vector.broadcast %cst_7 : f32 to vector<8x32xf32>
    %11 = arith.mulf %9, %10 : vector<8x32xf32>
    %12 = vector.extract_strided_slice %11 {offsets = [0, 0], sizes = [8, 8], strides = [1, 1]} : vector<8x32xf32> to vector<8x8xf32>
    %13 = vector.extract_strided_slice %11 {offsets = [0, 8], sizes = [8, 8], strides = [1, 1]} : vector<8x32xf32> to vector<8x8xf32>
    %14 = vector.extract_strided_slice %11 {offsets = [0, 16], sizes = [8, 8], strides = [1, 1]} : vector<8x32xf32> to vector<8x8xf32>
    %15 = vector.extract_strided_slice %11 {offsets = [0, 24], sizes = [8, 8], strides = [1, 1]} : vector<8x32xf32> to vector<8x8xf32>
    %16 = vector.shape_cast %12 : vector<8x8xf32> to vector<1x8x8xf32>
    %17 = vector.shape_cast %13 : vector<8x8xf32> to vector<1x8x8xf32>
    %18 = vector.shape_cast %14 : vector<8x8xf32> to vector<1x8x8xf32>
    %19 = vector.shape_cast %15 : vector<8x8xf32> to vector<1x8x8xf32>
    %20 = tpu.concatenate %16, %17, %18, %19 in 0 : vector<1x8x8xf32>, vector<1x8x8xf32>, vector<1x8x8xf32>, vector<1x8x8xf32> -> vector<4x8x8xf32>
    %21 = arith.truncf %20 : vector<4x8x8xf32> to vector<4x8x8xbf16>
    %c0_8 = arith.constant 0 : index
    %c0_9 = arith.constant 0 : index
    %c0_10 = arith.constant 0 : index
    %22 = vector.load %arg14[%c0_8, %c0_9, %c0_10] : memref<4x16x8xbf16, #tpu.memory_space<vmem>>, vector<4x16x8xbf16>
    %c0_11 = arith.constant 0 : index
    %c0_12 = arith.constant 0 : index
    %c0_13 = arith.constant 0 : index
    %23 = vector.load %arg15[%c0_11, %c0_12, %c0_13] : memref<4x16x8xbf16, #tpu.memory_space<vmem>>, vector<4x16x8xbf16>
    "tpu.trace_start"() <{level = 10 : i32, message = "hqd,hkd->hqk"}> : () -> ()
    %cst_14 = arith.constant dense<0.000000e+00> : vector<4x8x16xf32>
    %24 = tpu.matmul %21, %22, %cst_14 {dimension_numbers = #tpu.dot_dimension_numbers<[2], [2], [1], [1], [0, 0, 0, 1, 1, 1], [0], [0]>} : vector<4x8x8xbf16>, vector<4x16x8xbf16>, vector<4x8x16xf32> -> vector<4x8x16xf32>
    "tpu.trace_stop"() : () -> ()
    %cst_15 = arith.constant dense<0xFF800000> : vector<4x8xf32>
    %25 = vector.multi_reduction <maximumf>, %24, %cst_15 [2] : vector<4x8x16xf32> to vector<4x8xf32>
    %26 = vector.shape_cast %25 : vector<4x8xf32> to vector<4x8x1xf32>
    %27 = vector.broadcast %26 : vector<4x8x1xf32> to vector<4x8x16xf32>
    %28 = arith.subf %24, %27 : vector<4x8x16xf32>
    %29 = math.exp %28 : vector<4x8x16xf32>
    %cst_16 = arith.constant dense<0.000000e+00> : vector<4x8xf32>
    %30 = vector.multi_reduction <add>, %29, %cst_16 [2] : vector<4x8x16xf32> to vector<4x8xf32>
    %31 = vector.shape_cast %30 : vector<4x8xf32> to vector<4x8x1xf32>
    %32 = arith.truncf %29 : vector<4x8x16xf32> to vector<4x8x16xbf16>
    "tpu.trace_start"() <{level = 10 : i32, message = "hqk,hkd->hqd"}> : () -> ()
    %cst_17 = arith.constant dense<0.000000e+00> : vector<4x8x8xf32>
    %33 = tpu.matmul %32, %23, %cst_17 {dimension_numbers = #tpu.dot_dimension_numbers<[2], [1], [1], [2], [0, 0, 0, 1, 1, 2], [0], [0]>} : vector<4x8x16xbf16>, vector<4x16x8xbf16>, vector<4x8x8xf32> -> vector<4x8x8xf32>
    "tpu.trace_stop"() : () -> ()
    %34 = tpu.reciprocal %31 : vector<4x8x1xf32> -> vector<4x8x1xf32>
    %35 = vector.broadcast %34 : vector<4x8x1xf32> to vector<4x8x8xf32>
    %36 = arith.mulf %33, %35 : vector<4x8x8xf32>
    %37 = arith.truncf %36 : vector<4x8x8xf32> to vector<4x8x8xbf16>
    %38 = vector.extract_strided_slice %37 {offsets = [0, 0, 0], sizes = [1, 8, 8], strides = [1, 1, 1]} : vector<4x8x8xbf16> to vector<1x8x8xbf16>
    %39 = vector.shape_cast %38 : vector<1x8x8xbf16> to vector<8x8xbf16>
    %40 = vector.extract_strided_slice %37 {offsets = [1, 0, 0], sizes = [1, 8, 8], strides = [1, 1, 1]} : vector<4x8x8xbf16> to vector<1x8x8xbf16>
    %41 = vector.shape_cast %40 : vector<1x8x8xbf16> to vector<8x8xbf16>
    %42 = vector.extract_strided_slice %37 {offsets = [2, 0, 0], sizes = [1, 8, 8], strides = [1, 1, 1]} : vector<4x8x8xbf16> to vector<1x8x8xbf16>
    %43 = vector.shape_cast %42 : vector<1x8x8xbf16> to vector<8x8xbf16>
    %44 = vector.extract_strided_slice %37 {offsets = [3, 0, 0], sizes = [1, 8, 8], strides = [1, 1, 1]} : vector<4x8x8xbf16> to vector<1x8x8xbf16>
    %45 = vector.shape_cast %44 : vector<1x8x8xbf16> to vector<8x8xbf16>
    %46 = tpu.concatenate %39, %41, %43, %45 in 1 : vector<8x8xbf16>, vector<8x8xbf16>, vector<8x8xbf16>, vector<8x8xbf16> -> vector<8x32xbf16>
    %c0_18 = arith.constant 0 : index
    %c0_19 = arith.constant 0 : index
    %47 = vector.load %arg11[%c0_18, %c0_19] : memref<32x32xbf16, #tpu.memory_space<vmem>>, vector<32x32xbf16>
    %cst_20 = arith.constant dense<0.000000e+00> : vector<8x32xf32>
    %48 = tpu.matmul %46, %47, %cst_20 {dimension_numbers = #tpu.dot_dimension_numbers<[1], [0], [0], [1], [0, 0, 1, 1], [], []>} : vector<8x32xbf16>, vector<32x32xbf16>, vector<8x32xf32> -> vector<8x32xf32>
    %c0_21 = arith.constant 0 : index
    %c0_22 = arith.constant 0 : index
    %49 = vector.load %arg12[%c0_21, %c0_22] : memref<1x32xf32, #tpu.memory_space<vmem>>, vector<1x32xf32>
    %50 = vector.broadcast %49 : vector<1x32xf32> to vector<8x32xf32>
    %51 = arith.addf %48, %50 : vector<8x32xf32>
    %c0_23 = arith.constant 0 : index
    %c0_24 = arith.constant 0 : index
    %c0_25 = arith.constant 0 : index
    %52 = vector.load %arg13[%c0_23, %c0_24, %c0_25] : memref<1x8x32xf32, #tpu.memory_space<vmem>>, vector<1x8x32xf32>
    %53 = vector.shape_cast %52 : vector<1x8x32xf32> to vector<8x32xf32>
    %54 = vector.shape_cast %51 : vector<8x32xf32> to vector<1x8x32xf32>
    tpu.vector_store %arg13[%c0_23, %c0_24, %c0_25], %54 {strides = array<i32>} : memref<1x8x32xf32, #tpu.memory_space<vmem>>, vector<1x8x32xf32>,
    return
  }
  func.func @transform_0(%arg0: i32, %arg1: i32) -> (i32, i32, i32) {
    %c0_i32 = arith.constant 0 : i32
    %c0_i32_0 = arith.constant 0 : i32
    return %arg0, %arg1, %c0_i32 : i32, i32, i32
  }
  func.func @transform_1(%arg0: i32, %arg1: i32) -> (i32, i32, i32) {
    %c0_i32 = arith.constant 0 : i32
    %c0_i32_0 = arith.constant 0 : i32
    %c0_i32_1 = arith.constant 0 : i32
    return %arg0, %c0_i32, %c0_i32_0 : i32, i32, i32
  }
  func.func @transform_2(%arg0: i32, %arg1: i32) -> (i32, i32, i32) {
    %c0_i32 = arith.constant 0 : i32
    %c0_i32_0 = arith.constant 0 : i32
    %c0_i32_1 = arith.constant 0 : i32
    return %arg0, %c0_i32, %c0_i32_0 : i32, i32, i32
  }
  func.func @transform_3(%arg0: i32, %arg1: i32) -> (i32, i32) {
    %c0_i32 = arith.constant 0 : i32
    %c0_i32_0 = arith.constant 0 : i32
    %c0_i32_1 = arith.constant 0 : i32
    return %c0_i32, %c0_i32_0 : i32, i32
  }
  func.func @transform_4(%arg0: i32, %arg1: i32) -> (i32, i32) {
    %c0_i32 = arith.constant 0 : i32
    %c0_i32_0 = arith.constant 0 : i32
    %c0_i32_1 = arith.constant 0 : i32
    return %c0_i32, %c0_i32_0 : i32, i32
  }
  func.func @transform_5(%arg0: i32, %arg1: i32) -> (i32, i32) {
    %c0_i32 = arith.constant 0 : i32
    %c0_i32_0 = arith.constant 0 : i32
    %c0_i32_1 = arith.constant 0 : i32
    return %c0_i32, %c0_i32_0 : i32, i32
  }
  func.func @transform_6(%arg0: i32, %arg1: i32) -> (i32, i32) {
    %c0_i32 = arith.constant 0 : i32
    %c0_i32_0 = arith.constant 0 : i32
    %c0_i32_1 = arith.constant 0 : i32
    return %c0_i32, %c0_i32_0 : i32, i32
  }
  func.func @transform_7(%arg0: i32, %arg1: i32) -> (i32, i32) {
    %c0_i32 = arith.constant 0 : i32
    %c0_i32_0 = arith.constant 0 : i32
    %c0_i32_1 = arith.constant 0 : i32
    return %c0_i32, %c0_i32_0 : i32, i32
  }
  func.func @transform_8(%arg0: i32, %arg1: i32) -> (i32, i32) {
    %c0_i32 = arith.constant 0 : i32
    %c0_i32_0 = arith.constant 0 : i32
    %c0_i32_1 = arith.constant 0 : i32
    return %c0_i32, %c0_i32_0 : i32, i32
  }
  func.func @transform_9(%arg0: i32, %arg1: i32) -> (i32, i32) {
    %c0_i32 = arith.constant 0 : i32
    %c0_i32_0 = arith.constant 0 : i32
    %c0_i32_1 = arith.constant 0 : i32
    return %c0_i32, %c0_i32_0 : i32, i32
  }
  func.func @transform_10(%arg0: i32, %arg1: i32) -> (i32, i32) {
    %c0_i32 = arith.constant 0 : i32
    %c0_i32_0 = arith.constant 0 : i32
    %c0_i32_1 = arith.constant 0 : i32
    return %c0_i32, %c0_i32_0 : i32, i32
  }
  func.func @transform_11(%arg0: i32, %arg1: i32) -> (i32, i32, i32) {
    %c0_i32 = arith.constant 0 : i32
    %c0_i32_0 = arith.constant 0 : i32
    return %arg0, %arg1, %c0_i32 : i32, i32, i32
  }
}

</mosaic_0001>

<llo_original>
// kernel: tpu_custom_call.1
$region0: #{tpu_custom_call.1}
  #allocation0 [shape = 'u32[]', space=smem, size = 0x4, offset = 0x4, fixed_abs, tag = 'smem constant byte address 0x4 - core index']
  #allocation1 [shape = 'u32[144,128]{1,0:T(1,128)}', space=vmem, size = 0x12000, scoped, tag = 'internal scratch']
  #allocation2 [shape = 'bf16[4,16,8]{2,1,0:T(16,128)(2,1)}', space=vmem, size = 0x4000, scoped, tag = 'scratch operand']
  #allocation3 [shape = 'bf16[4,16,8]{2,1,0:T(16,128)(2,1)}', space=vmem, size = 0x4000, scoped, tag = 'scratch operand']
  %s0 = inlined_call_operand.hbm [shape: bf16[2,16,32], index: 0, kind: input, shape index: {}]
  %s1 = inlined_call_operand.hbm [shape: bf16[2,16,32], index: 1, kind: input, shape index: {}]
  %s2 = inlined_call_operand.hbm [shape: bf16[2,16,32], index: 2, kind: input, shape index: {}]
  %s3 = inlined_call_operand.hbm [shape: bf16[32,32], index: 3, kind: input, shape index: {}]
  %s4 = inlined_call_operand.vmem [shape: f32[1,32], index: 4, kind: input, shape index: {}]
  %s5 = inlined_call_operand.vmem [shape: bf16[32,32], index: 5, kind: input, shape index: {}]
  %s6 = inlined_call_operand.vmem [shape: f32[1,32], index: 6, kind: input, shape index: {}]
  %s7 = inlined_call_operand.hbm [shape: bf16[32,32], index: 7, kind: input, shape index: {}]
  %s8 = inlined_call_operand.hbm [shape: f32[1,32], index: 8, kind: input, shape index: {}]
  %s9 = inlined_call_operand.vmem [shape: bf16[32,32], index: 9, kind: input, shape index: {}]
  %s10 = inlined_call_operand.vmem [shape: f32[1,32], index: 10, kind: input, shape index: {}]
  %s11 = inlined_call_operand.hbm [shape: f32[2,16,32], index: 11, kind: output, shape index: {}]
  %s12 = sld [smem:[#allocation0]]
  $region105: #{tpu_custom_call.1} parent=0
    _
  %s14 = ssub.s32 1, %s12
  %s15 = scalar_select 0, %s14, %s12
  $region1: #{tpu_custom_call.1} parent=0
    #allocation4 [shape = 'u8[4096]{0}', space=vmem, size = 0x1000, scoped, tag = 'input window, operand 0']
    #allocation5 [shape = 's32[2]{0}', space=sflag, size = 0x8, scoped, tag = 'scoped memory for tpu_custom_call.1']
    #allocation6 [shape = 's32[2]{0}', space=sflag, size = 0x8, scoped, tag = 'scoped memory for tpu_custom_call.1']
    #allocation7 [shape = 'u8[8192]{0}', space=vmem, size = 0x2000, scoped, tag = 'input window, operand 1']
    #allocation8 [shape = 's32[2]{0}', space=sflag, size = 0x8, scoped, tag = 'scoped memory for tpu_custom_call.1']
    #allocation9 [shape = 'u8[8192]{0}', space=vmem, size = 0x2000, scoped, tag = 'input window, operand 2']
    #allocation10 [shape = 'u8[8192]{0}', space=vmem, size = 0x2000, scoped, tag = 'input window, operand 3, single buffered']
    #allocation11 [shape = 's32[1]{0}', space=sflag, size = 0x4, scoped, tag = 'scoped memory for tpu_custom_call.1']
    #allocation12 [shape = 'u8[8192]{0}', space=vmem, size = 0x2000, scoped, tag = 'input window, operand 7, single buffered']
    #allocation13 [shape = 'u8[512]{0}', space=vmem, size = 0x400, scoped, tag = 'input window, operand 8, single buffered']
    #allocation14 [shape = 's32[1]{0}', space=sflag, size = 0x4, scoped, tag = 'scoped memory for tpu_custom_call.1']
    #allocation15 [shape = 'u8[8192]{0}', space=vmem, size = 0x2000, scoped, tag = 'output window, operand 0']
    %16 = vsyncpa [#allocation5], 0
    %s17 = scalar_lea.sflag [#allocation5], 1
    %18 = vsyncpa %s17, 0
    %19 = vsyncpa [#allocation8], 0
    %s20 = scalar_lea.sflag [#allocation8], 1
    %21 = vsyncpa %s20, 0
    %22 = vsyncpa [#allocation11], 0
    %23 = vsyncpa [#allocation14], 0
    %24 = vsyncpa [#allocation6], 0
    %s25 = scalar_lea.sflag [#allocation6], 1
    %26 = vsyncpa %s25, 0
    loop: start=0, step=1, limit=6
    $region2: #{tpu_custom_call.1} parent=1 // loop_pre_header
      _
    $region3: #{tpu_custom_call.1} parent=1 // loop_header
      %s28 = sphi 0, %s32
      %p29 = scmp.ge.s32.totalorder %s28, 6
      %s35 = sphi 0, %s47
      %s36 = sphi 0, %s43
      %s37 = sphi 0, %s35
      %s38 = sphi 0, %s36
      %s39 = sphi 0, %s37
      %s40 = sphi 0, %s38
      %s52 = sphi 0, %s54
      %s55 = sphi 0, %s52
      %s56 = sphi 0, %s55
      %s72 = sphi 0, %s56
      %s78 = sphi 0, %s80
      %s81 = sphi 0, %s78
      %s82 = sphi 0, %s81
      %s98 = sphi 0, %s82
      %s104 = sphi 0, %s106
      %s107 = sphi 0, %s104
      %s108 = sphi 0, %s107
      %s124 = sphi 0, %s108
      %s128 = sphi 0, %s128
      %s130 = sphi 0, %s128
      %s131 = sphi 0, %s130
      %s145 = sphi 0, %s131
      %s149 = sphi 0, %s149
      %s151 = sphi 0, %s149
      %s152 = sphi 0, %s151
      %s166 = sphi 0, %s152
      %s170 = sphi 0, %s170
      %s172 = sphi 0, %s170
      %s173 = sphi 0, %s172
      %s187 = sphi 0, %s173
      %s191 = sphi 0, %s191
      %s193 = sphi 0, %s191
      %s194 = sphi 0, %s193
      %s208 = sphi 0, %s194
      %s212 = sphi 0, %s212
      %s214 = sphi 0, %s212
      %s215 = sphi 0, %s214
      %s229 = sphi 0, %s215
      %s233 = sphi 0, %s233
      %s235 = sphi 0, %s233
      %s236 = sphi 0, %s235
      %s250 = sphi 0, %s236
      %s254 = sphi 0, %s254
      %s256 = sphi 0, %s254
      %s257 = sphi 0, %s256
      %s271 = sphi 0, %s257
      %s275 = sphi 0, %s275
      %s277 = sphi 0, %s275
      %s278 = sphi 0, %s277
      %s292 = sphi 0, %s278
      %s300 = sphi 0, %s302
      %s303 = sphi 0, %s300
      %s304 = sphi 0, %s303
      %s320 = sphi 0, %s304
    $region4: #{tpu_custom_call.1} parent=1 // loop_header_branch
      %31 = sbr.rel (%p29) target = $region8
    $region5: #{tpu_custom_call.1} parent=1 // loop_body
      %s33 = ssub.s32 %s28, 1
      %s34 = ssub.s32 %s28, 2
      %s41 = sadd.s32 1, %s36
      %p42 = scmp.ge.s32.totalorder %s41, 2
      %s43 = scalar_select %p42, 0, %s41
      %s44 = sadd.s32 1, %s35
      %s45 = scalar_select %p42, %s44, %s35
      %p46 = scmp.ge.s32.totalorder %s45, 2
      %s47 = scalar_select %p46, 0, %s45
      %s48 = ssub.s32 %s35, %s47
      %s49 = ssub.s32 %s36, %s43
      %s50 = sor.u32 %s48, %s49
      %p51 = scmp.eq.s32.totalorder %s50, 0
      %s53 = sadd.s32 %s52, 1
      %s54 = scalar_select %p51, %s52, %s53
      %p57 = pneg %p51
      %p58 = scmp.eq.s32.totalorder %s28, 3
      %p59 = por %p57, %p58
      %p60 = scmp.ne.s32.totalorder %s52, %s55
      %p61 = scmp.eq.s32.totalorder %s28, 0
      %p62 = por %p60, %p61
      %p63 = scmp.ne.s32.totalorder %s52, %s55
      %p64 = scmp.eq.s32.totalorder %s33, 3
      %p65 = por %p63, %p64
      %p66 = scmp.ne.s32.totalorder %s55, %s56
      %p67 = scmp.eq.s32.totalorder %s33, 0
      %p68 = por %p66, %p67
      %p69 = scmp.ne.s32.totalorder %s55, %s56
      %p70 = scmp.eq.s32.totalorder %s34, 3
      %p71 = por %p69, %p70
      %p73 = scmp.ne.s32.totalorder %s56, %s72
      %p74 = scmp.eq.s32.totalorder %s34, 0
      %p75 = por %p73, %p74
      %s76 = ssub.s32 %s35, %s47
      %p77 = scmp.eq.s32.totalorder %s76, 0
      %s79 = sadd.s32 %s78, 1
      %s80 = scalar_select %p77, %s78, %s79
      %p83 = pneg %p77
      %p84 = scmp.eq.s32.totalorder %s28, 3
      %p85 = por %p83, %p84
      %p86 = scmp.ne.s32.totalorder %s78, %s81
      %p87 = scmp.eq.s32.totalorder %s28, 0
      %p88 = por %p86, %p87
      %p89 = scmp.ne.s32.totalorder %s78, %s81
      %p90 = scmp.eq.s32.totalorder %s33, 3
      %p91 = por %p89, %p90
      %p92 = scmp.ne.s32.totalorder %s81, %s82
      %p93 = scmp.eq.s32.totalorder %s33, 0
      %p94 = por %p92, %p93
      %p95 = scmp.ne.s32.totalorder %s81, %s82
      %p96 = scmp.eq.s32.totalorder %s34, 3
      %p97 = por %p95, %p96
      %p99 = scmp.ne.s32.totalorder %s82, %s98
      %p100 = scmp.eq.s32.totalorder %s34, 0
      %p101 = por %p99, %p100
      %s102 = ssub.s32 %s35, %s47
      %p103 = scmp.eq.s32.totalorder %s102, 0
      %s105 = sadd.s32 %s104, 1
      %s106 = scalar_select %p103, %s104, %s105
      %p109 = pneg %p103
      %p110 = scmp.eq.s32.totalorder %s28, 3
      %p111 = por %p109, %p110
      %p112 = scmp.ne.s32.totalorder %s104, %s107
      %p113 = scmp.eq.s32.totalorder %s28, 0
      %p114 = por %p112, %p113
      %p115 = scmp.ne.s32.totalorder %s104, %s107
      %p116 = scmp.eq.s32.totalorder %s33, 3
      %p117 = por %p115, %p116
      %p118 = scmp.ne.s32.totalorder %s107, %s108
      %p119 = scmp.eq.s32.totalorder %s33, 0
      %p120 = por %p118, %p119
      %p121 = scmp.ne.s32.totalorder %s107, %s108
      %p122 = scmp.eq.s32.totalorder %s34, 3
      %p123 = por %p121, %p122
      %p125 = scmp.ne.s32.totalorder %s108, %s124
      %p126 = scmp.eq.s32.totalorder %s34, 0
      %p127 = por %p125, %p126
      %s129 = sadd.s32 %s128, 1
      %p132 = scmp.eq.s32.totalorder %s28, 3
      %p133 = scmp.ne.s32.totalorder %s128, %s130
      %p134 = scmp.eq.s32.totalorder %s28, 0
      %p135 = por %p133, %p134
      %p136 = scmp.ne.s32.totalorder %s128, %s130
      %p137 = scmp.eq.s32.totalorder %s33, 3
      %p138 = por %p136, %p137
      %p139 = scmp.ne.s32.totalorder %s130, %s131
      %p140 = scmp.eq.s32.totalorder %s33, 0
      %p141 = por %p139, %p140
      %p142 = scmp.ne.s32.totalorder %s130, %s131
      %p143 = scmp.eq.s32.totalorder %s34, 3
      %p144 = por %p142, %p143
      %p146 = scmp.ne.s32.totalorder %s131, %s145
      %p147 = scmp.eq.s32.totalorder %s34, 0
      %p148 = por %p146, %p147
      %s150 = sadd.s32 %s149, 1
      %p153 = scmp.eq.s32.totalorder %s28, 3
      %p154 = scmp.ne.s32.totalorder %s149, %s151
      %p155 = scmp.eq.s32.totalorder %s28, 0
      %p156 = por %p154, %p155
      %p157 = scmp.ne.s32.totalorder %s149, %s151
      %p158 = scmp.eq.s32.totalorder %s33, 3
      %p159 = por %p157, %p158
      %p160 = scmp.ne.s32.totalorder %s151, %s152
      %p161 = scmp.eq.s32.totalorder %s33, 0
      %p162 = por %p160, %p161
      %p163 = scmp.ne.s32.totalorder %s151, %s152
      %p164 = scmp.eq.s32.totalorder %s34, 3
      %p165 = por %p163, %p164
      %p167 = scmp.ne.s32.totalorder %s152, %s166
      %p168 = scmp.eq.s32.totalorder %s34, 0
      %p169 = por %p167, %p168
      %s171 = sadd.s32 %s170, 1
      %p174 = scmp.eq.s32.totalorder %s28, 3
      %p175 = scmp.ne.s32.totalorder %s170, %s172
      %p176 = scmp.eq.s32.totalorder %s28, 0
      %p177 = por %p175, %p176
      %p178 = scmp.ne.s32.totalorder %s170, %s172
      %p179 = scmp.eq.s32.totalorder %s33, 3
      %p180 = por %p178, %p179
      %p181 = scmp.ne.s32.totalorder %s172, %s173
      %p182 = scmp.eq.s32.totalorder %s33, 0
      %p183 = por %p181, %p182
      %p184 = scmp.ne.s32.totalorder %s172, %s173
      %p185 = scmp.eq.s32.totalorder %s34, 3
      %p186 = por %p184, %p185
      %p188 = scmp.ne.s32.totalorder %s173, %s187
      %p189 = scmp.eq.s32.totalorder %s34, 0
      %p190 = por %p188, %p189
      %s192 = sadd.s32 %s191, 1
      %p195 = scmp.eq.s32.totalorder %s28, 3
      %p196 = scmp.ne.s32.totalorder %s191, %s193
      %p197 = scmp.eq.s32.totalorder %s28, 0
      %p198 = por %p196, %p197
      %p199 = scmp.ne.s32.totalorder %s191, %s193
      %p200 = scmp.eq.s32.totalorder %s33, 3
      %p201 = por %p199, %p200
      %p202 = scmp.ne.s32.totalorder %s193, %s194
      %p203 = scmp.eq.s32.totalorder %s33, 0
      %p204 = por %p202, %p203
      %p205 = scmp.ne.s32.totalorder %s193, %s194
      %p206 = scmp.eq.s32.totalorder %s34, 3
      %p207 = por %p205, %p206
      %p209 = scmp.ne.s32.totalorder %s194, %s208
      %p210 = scmp.eq.s32.totalorder %s34, 0
      %p211 = por %p209, %p210
      %s213 = sadd.s32 %s212, 1
      %p216 = scmp.eq.s32.totalorder %s28, 3
      %p217 = scmp.ne.s32.totalorder %s212, %s214
      %p218 = scmp.eq.s32.totalorder %s28, 0
      %p219 = por %p217, %p218
      %p220 = scmp.ne.s32.totalorder %s212, %s214
      %p221 = scmp.eq.s32.totalorder %s33, 3
      %p222 = por %p220, %p221
      %p223 = scmp.ne.s32.totalorder %s214, %s215
      %p224 = scmp.eq.s32.totalorder %s33, 0
      %p225 = por %p223, %p224
      %p226 = scmp.ne.s32.totalorder %s214, %s215
      %p227 = scmp.eq.s32.totalorder %s34, 3
      %p228 = por %p226, %p227
      %p230 = scmp.ne.s32.totalorder %s215, %s229
      %p231 = scmp.eq.s32.totalorder %s34, 0
      %p232 = por %p230, %p231
      %s234 = sadd.s32 %s233, 1
      %p237 = scmp.eq.s32.totalorder %s28, 3
      %p238 = scmp.ne.s32.totalorder %s233, %s235
      %p239 = scmp.eq.s32.totalorder %s28, 0
      %p240 = por %p238, %p239
      %p241 = scmp.ne.s32.totalorder %s233, %s235
      %p242 = scmp.eq.s32.totalorder %s33, 3
      %p243 = por %p241, %p242
      %p244 = scmp.ne.s32.totalorder %s235, %s236
      %p245 = scmp.eq.s32.totalorder %s33, 0
      %p246 = por %p244, %p245
      %p247 = scmp.ne.s32.totalorder %s235, %s236
      %p248 = scmp.eq.s32.totalorder %s34, 3
      %p249 = por %p247, %p248
      %p251 = scmp.ne.s32.totalorder %s236, %s250
      %p252 = scmp.eq.s32.totalorder %s34, 0
      %p253 = por %p251, %p252
      %s255 = sadd.s32 %s254, 1
      %p258 = scmp.eq.s32.totalorder %s28, 3
      %p259 = scmp.ne.s32.totalorder %s254, %s256
      %p260 = scmp.eq.s32.totalorder %s28, 0
      %p261 = por %p259, %p260
      %p262 = scmp.ne.s32.totalorder %s254, %s256
      %p263 = scmp.eq.s32.totalorder %s33, 3
      %p264 = por %p262, %p263
      %p265 = scmp.ne.s32.totalorder %s256, %s257
      %p266 = scmp.eq.s32.totalorder %s33, 0
      %p267 = por %p265, %p266
      %p268 = scmp.ne.s32.totalorder %s256, %s257
      %p269 = scmp.eq.s32.totalorder %s34, 3
      %p270 = por %p268, %p269
      %p272 = scmp.ne.s32.totalorder %s257, %s271
      %p273 = scmp.eq.s32.totalorder %s34, 0
      %p274 = por %p272, %p273
      %s276 = sadd.s32 %s275, 1
      %p279 = scmp.eq.s32.totalorder %s28, 3
      %p280 = scmp.ne.s32.totalorder %s275, %s277
      %p281 = scmp.eq.s32.totalorder %s28, 0
      %p282 = por %p280, %p281
      %p283 = scmp.ne.s32.totalorder %s275, %s277
      %p284 = scmp.eq.s32.totalorder %s33, 3
      %p285 = por %p283, %p284
      %p286 = scmp.ne.s32.totalorder %s277, %s278
      %p287 = scmp.eq.s32.totalorder %s33, 0
      %p288 = por %p286, %p287
      %p289 = scmp.ne.s32.totalorder %s277, %s278
      %p290 = scmp.eq.s32.totalorder %s34, 3
      %p291 = por %p289, %p290
      %p293 = scmp.ne.s32.totalorder %s278, %s292
      %p294 = scmp.eq.s32.totalorder %s34, 0
      %p295 = por %p293, %p294
      %s296 = ssub.s32 %s35, %s47
      %s297 = ssub.s32 %s36, %s43
      %s298 = sor.u32 %s296, %s297
      %p299 = scmp.eq.s32.totalorder %s298, 0
      %s301 = sadd.s32 %s300, 1
      %s302 = scalar_select %p299, %s300, %s301
      %p305 = pneg %p299
      %p306 = scmp.eq.s32.totalorder %s28, 3
      %p307 = por %p305, %p306
      %p308 = scmp.ne.s32.totalorder %s300, %s303
      %p309 = scmp.eq.s32.totalorder %s28, 0
      %p310 = por %p308, %p309
      %p311 = scmp.ne.s32.totalorder %s300, %s303
      %p312 = scmp.eq.s32.totalorder %s33, 3
      %p313 = por %p311, %p312
      %p314 = scmp.ne.s32.totalorder %s303, %s304
      %p315 = scmp.eq.s32.totalorder %s33, 0
      %p316 = por %p314, %p315
      %p317 = scmp.ne.s32.totalorder %s303, %s304
      %p318 = scmp.eq.s32.totalorder %s34, 3
      %p319 = por %p317, %p318
      %p321 = scmp.ne.s32.totalorder %s304, %s320
      %p322 = scmp.eq.s32.totalorder %s34, 0
      %p323 = por %p321, %p322
      %p324 = scmp.le.s32.totalorder 1, %s28
      %p325 = scmp.lt.s32.totalorder %s28, 5
      %p326 = pnand %p324, %p325
      %p327 = pneg %p326
      // Predicated region
      $region9: #{tpu_custom_call.1} parent=5 // pred_check
        _
      $region10: #{tpu_custom_call.1} parent=5 // pred_check_branch
        %329 = sbr.rel (%p326) target = $region12
      $region11: #{tpu_custom_call.1} parent=5 // pred_region
        %s330 = ssub.s32 %s28, 1
        // Predicated region
        $region13: #{tpu_custom_call.1} parent=11 // pred_check
          %p331 = pneg %p141
        $region14: #{tpu_custom_call.1} parent=11 // pred_check_branch
          %333 = sbr.rel (%p331) target = $region16
        $region15: #{tpu_custom_call.1} parent=11 // pred_region
          %s335 = ssub.s32 256, 256
          %336 = vsyncadd [#allocation11], %s335
          %s337 = sshll.u32 [#allocation10], 4
          %s338 = int_to_ptr.vmem [resolvable:$true] %s337
          %343 = dma.hbm_to_vmem [thread:$0]  %s3, 256, %s338, [#allocation11], 64, 64, 4
        $region16: #{tpu_custom_call.1} parent=11 // pred_fallthru
          _
        // Predicated region
        $region17: #{tpu_custom_call.1} parent=11 // pred_check
          %p344 = pneg %p162
        $region18: #{tpu_custom_call.1} parent=11 // pred_check_branch
          %346 = sbr.rel (%p344) target = $region20
        $region19: #{tpu_custom_call.1} parent=11 // pred_region
          _
        $region20: #{tpu_custom_call.1} parent=11 // pred_fallthru
          _
        // Predicated region
        $region21: #{tpu_custom_call.1} parent=11 // pred_check
          %p347 = pneg %p183
        $region22: #{tpu_custom_call.1} parent=11 // pred_check_branch
          %349 = sbr.rel (%p347) target = $region24
        $region23: #{tpu_custom_call.1} parent=11 // pred_region
          _
        $region24: #{tpu_custom_call.1} parent=11 // pred_fallthru
          _
        // Predicated region
        $region25: #{tpu_custom_call.1} parent=11 // pred_check
          %p350 = pneg %p204
        $region26: #{tpu_custom_call.1} parent=11 // pred_check_branch
          %352 = sbr.rel (%p350) target = $region28
        $region27: #{tpu_custom_call.1} parent=11 // pred_region
          _
        $region28: #{tpu_custom_call.1} parent=11 // pred_fallthru
          _
        // Predicated region
        $region29: #{tpu_custom_call.1} parent=11 // pred_check
          %p353 = pneg %p225
        $region30: #{tpu_custom_call.1} parent=11 // pred_check_branch
          %355 = sbr.rel (%p353) target = $region32
        $region31: #{tpu_custom_call.1} parent=11 // pred_region
          %s357 = ssub.s32 256, 256
          %358 = vsyncadd [#allocation11], %s357
          %s359 = sshll.u32 [#allocation12], 4
          %s360 = int_to_ptr.vmem [resolvable:$true] %s359
          %365 = dma.hbm_to_vmem [thread:$0]  %s7, 256, %s360, [#allocation11], 64, 64, 4
        $region32: #{tpu_custom_call.1} parent=11 // pred_fallthru
          _
        // Predicated region
        $region33: #{tpu_custom_call.1} parent=11 // pred_check
          %p366 = pneg %p246
        $region34: #{tpu_custom_call.1} parent=11 // pred_check_branch
          %368 = sbr.rel (%p366) target = $region36
        $region35: #{tpu_custom_call.1} parent=11 // pred_region
          %s370 = ssub.s32 16, 16
          %371 = vsyncadd [#allocation14], %s370
          %s373 = sshll.u32 [#allocation13], 4
          %s374 = int_to_ptr.vmem [resolvable:$true] %s373
          %376 = dma.hbm_to_vmem [thread:$0]  %s8, 16, %s374, [#allocation14]
        $region36: #{tpu_custom_call.1} parent=11 // pred_fallthru
          _
        // Predicated region
        $region37: #{tpu_custom_call.1} parent=11 // pred_check
          %p377 = pneg %p267
        $region38: #{tpu_custom_call.1} parent=11 // pred_check_branch
          %379 = sbr.rel (%p377) target = $region40
        $region39: #{tpu_custom_call.1} parent=11 // pred_region
          _
        $region40: #{tpu_custom_call.1} parent=11 // pred_fallthru
          _
        // Predicated region
        $region41: #{tpu_custom_call.1} parent=11 // pred_check
          %p380 = pneg %p288
        $region42: #{tpu_custom_call.1} parent=11 // pred_check_branch
          %382 = sbr.rel (%p380) target = $region44
        $region43: #{tpu_custom_call.1} parent=11 // pred_region
          _
        $region44: #{tpu_custom_call.1} parent=11 // pred_fallthru
          _
      $region12: #{tpu_custom_call.1} parent=5 // pred_fallthru
        _
      %p383 = scmp.lt.s32.totalorder %s28, 4
      // Predicated region
      $region45: #{tpu_custom_call.1} parent=5 // pred_check
        %p384 = pneg %p383
      $region46: #{tpu_custom_call.1} parent=5 // pred_check_branch
        %386 = sbr.rel (%p384) target = $region48
      $region47: #{tpu_custom_call.1} parent=5 // pred_region
        // Predicated region
        $region49: #{tpu_custom_call.1} parent=47 // pred_check
          %p387 = pneg %p62
        $region50: #{tpu_custom_call.1} parent=47 // pred_check_branch
          %389 = sbr.rel (%p387) target = $region52
        $region51: #{tpu_custom_call.1} parent=47 // pred_region
          %s390 = sand.u32 %s52, 1
          %s391 = scalar_lea.sflag [#allocation5], %s390
          %s392 = sand.u32 %s52, 1
          %s393 = smul.addr %s392, 4
          %s394 = scalar_lea.vmem [#allocation4], %s393
          %s396 = ssub.s32 64, 64
          %397 = vsyncadd %s391, %s396
          %s398 = smul.addr %s35, 2
          %s399 = sadd.s32 %s36, %s398
          %s400 = smul.addr %s399, 64
          %s401 = scalar_lea.hbm %s0, %s400
          %s403 = sshll.u32 %s394, 4
          %s404 = int_to_ptr.vmem [resolvable:$true] %s403
          %406 = dma.hbm_to_vmem [thread:$0]  %s401, 64, %s404, %s391
        $region52: #{tpu_custom_call.1} parent=47 // pred_fallthru
          _
        // Predicated region
        $region53: #{tpu_custom_call.1} parent=47 // pred_check
          %p407 = pneg %p88
        $region54: #{tpu_custom_call.1} parent=47 // pred_check_branch
          %409 = sbr.rel (%p407) target = $region56
        $region55: #{tpu_custom_call.1} parent=47 // pred_region
          %s410 = sand.u32 %s28, 1
          %s411 = scalar_lea.sflag [#allocation8], %s410
          %s412 = sand.u32 %s78, 1
          %s413 = smul.addr %s412, 8
          %s414 = scalar_lea.vmem [#allocation7], %s413
          %s416 = ssub.s32 128, 128
          %417 = vsyncadd %s411, %s416
          %s418 = smul.addr %s35, 2
          %s419 = smul.addr %s418, 64
          %s420 = scalar_lea.hbm %s1, %s419
          %s421 = sshll.u32 %s414, 4
          %s422 = int_to_ptr.vmem [resolvable:$true] %s421
          %427 = dma.hbm_to_vmem [thread:$0]  %s420, 128, %s422, %s411, 64, 64, 4
        $region56: #{tpu_custom_call.1} parent=47 // pred_fallthru
          _
        // Predicated region
        $region57: #{tpu_custom_call.1} parent=47 // pred_check
          %p428 = pneg %p114
        $region58: #{tpu_custom_call.1} parent=47 // pred_check_branch
          %430 = sbr.rel (%p428) target = $region60
        $region59: #{tpu_custom_call.1} parent=47 // pred_region
          %s431 = sand.u32 %s28, 1
          %s432 = scalar_lea.sflag [#allocation8], %s431
          %s433 = sand.u32 %s104, 1
          %s434 = smul.addr %s433, 8
          %s435 = scalar_lea.vmem [#allocation9], %s434
          %s437 = ssub.s32 128, 128
          %438 = vsyncadd %s432, %s437
          %s439 = smul.addr %s35, 2
          %s440 = smul.addr %s439, 64
          %s441 = scalar_lea.hbm %s2, %s440
          %s442 = sshll.u32 %s435, 4
          %s443 = int_to_ptr.vmem [resolvable:$true] %s442
          %448 = dma.hbm_to_vmem [thread:$0]  %s441, 128, %s443, %s432, 64, 64, 4
        $region60: #{tpu_custom_call.1} parent=47 // pred_fallthru
          _
      $region48: #{tpu_custom_call.1} parent=5 // pred_fallthru
        _
      %p449 = scmp.le.s32.totalorder 1, %s28
      %p450 = scmp.lt.s32.totalorder %s28, 5
      %p451 = pnand %p449, %p450
      %p452 = pneg %p451
      // Predicated region
      $region61: #{tpu_custom_call.1} parent=5 // pred_check
        _
      $region62: #{tpu_custom_call.1} parent=5 // pred_check_branch
        %454 = sbr.rel (%p451) target = $region64
      $region63: #{tpu_custom_call.1} parent=5 // pred_region
        %s455 = ssub.s32 %s28, 1
        %s456 = sand.u32 %s55, 1
        %s457 = scalar_lea.sflag [#allocation5], %s456
        %s458 = sand.u32 %s55, 1
        %s459 = smul.addr %s458, 4
        %s460 = scalar_lea.vmem [#allocation4], %s459
        // Predicated region
        $region65: #{tpu_custom_call.1} parent=63 // pred_check
          %p461 = pneg %p68
        $region66: #{tpu_custom_call.1} parent=63 // pred_check_branch
          %463 = sbr.rel (%p461) target = $region68
        $region67: #{tpu_custom_call.1} parent=63 // pred_region
          %464 = dma.done %s457, 64
        $region68: #{tpu_custom_call.1} parent=63 // pred_fallthru
          _
        %s465 = sand.u32 %s33, 1
        %s466 = scalar_lea.sflag [#allocation8], %s465
        %s467 = sand.u32 %s81, 1
        %s468 = smul.addr %s467, 8
        %s469 = scalar_lea.vmem [#allocation7], %s468
        // Predicated region
        $region69: #{tpu_custom_call.1} parent=63 // pred_check
          %p470 = pneg %p94
        $region70: #{tpu_custom_call.1} parent=63 // pred_check_branch
          %472 = sbr.rel (%p470) target = $region72
        $region71: #{tpu_custom_call.1} parent=63 // pred_region
          %473 = dma.done %s466, 128
        $region72: #{tpu_custom_call.1} parent=63 // pred_fallthru
          _
        %s474 = sand.u32 %s33, 1
        %s475 = scalar_lea.sflag [#allocation8], %s474
        %s476 = sand.u32 %s107, 1
        %s477 = smul.addr %s476, 8
        %s478 = scalar_lea.vmem [#allocation9], %s477
        // Predicated region
        $region73: #{tpu_custom_call.1} parent=63 // pred_check
          %p479 = pneg %p120
        $region74: #{tpu_custom_call.1} parent=63 // pred_check_branch
          %481 = sbr.rel (%p479) target = $region76
        $region75: #{tpu_custom_call.1} parent=63 // pred_region
          %482 = dma.done %s475, 128
        $region76: #{tpu_custom_call.1} parent=63 // pred_fallthru
          _
        // Predicated region
        $region77: #{tpu_custom_call.1} parent=63 // pred_check
          %p483 = pneg %p141
        $region78: #{tpu_custom_call.1} parent=63 // pred_check_branch
          %485 = sbr.rel (%p483) target = $region80
        $region79: #{tpu_custom_call.1} parent=63 // pred_region
          %486 = dma.done [#allocation11], 256
        $region80: #{tpu_custom_call.1} parent=63 // pred_fallthru
          _
        // Predicated region
        $region81: #{tpu_custom_call.1} parent=63 // pred_check
          %p487 = pneg %p225
        $region82: #{tpu_custom_call.1} parent=63 // pred_check_branch
          %489 = sbr.rel (%p487) target = $region84
        $region83: #{tpu_custom_call.1} parent=63 // pred_region
          %490 = dma.done [#allocation11], 256
        $region84: #{tpu_custom_call.1} parent=63 // pred_fallthru
          _
        // Predicated region
        $region85: #{tpu_custom_call.1} parent=63 // pred_check
          %p491 = pneg %p246
        $region86: #{tpu_custom_call.1} parent=63 // pred_check_branch
          %493 = sbr.rel (%p491) target = $region88
        $region87: #{tpu_custom_call.1} parent=63 // pred_region
          %494 = dma.done [#allocation14], 16
        $region88: #{tpu_custom_call.1} parent=63 // pred_fallthru
          _
        %s495 = sand.u32 %s55, 1
        %s496 = scalar_lea.sflag [#allocation5], %s495
        %s497 = sand.u32 %s55, 1
        %s498 = smul.addr %s497, 4
        %s499 = scalar_lea.vmem [#allocation4], %s498
        %p500 = pneg %p68
        %p501 = pneg %p65
        %s502 = sand.u32 %s33, 1
        %s503 = scalar_lea.sflag [#allocation8], %s502
        %s504 = sand.u32 %s81, 1
        %s505 = smul.addr %s504, 8
        %s506 = scalar_lea.vmem [#allocation7], %s505
        %p507 = pneg %p94
        %p508 = pneg %p91
        %s509 = sand.u32 %s33, 1
        %s510 = scalar_lea.sflag [#allocation8], %s509
        %s511 = sand.u32 %s107, 1
        %s512 = smul.addr %s511, 8
        %s513 = scalar_lea.vmem [#allocation9], %s512
        %p514 = pneg %p120
        %p515 = pneg %p117
        %p516 = pneg %p141
        %p517 = pneg %p138
        %p518 = pneg %p162
        %p519 = pneg %p159
        %p520 = pneg %p183
        %p521 = pneg %p180
        %p522 = pneg %p204
        %p523 = pneg %p201
        %p524 = pneg %p225
        %p525 = pneg %p222
        %p526 = pneg %p246
        %p527 = pneg %p243
        %p528 = pneg %p267
        %p529 = pneg %p264
        %p530 = pneg %p288
        %p531 = pneg %p285
        %p532 = pneg %p316
        %p533 = pneg %p313
        %s534 = sand.u32 %s303, 1
        %s535 = scalar_lea.sflag [#allocation6], %s534
        %s536 = sand.u32 %s303, 1
        %s537 = smul.addr %s536, 8
        %s538 = scalar_lea.vmem [#allocation15], %s537
        %p540 = scmp.eq.s32.totalorder %s38, 0
        // Predicated region
        $region89: #{tpu_custom_call.1} parent=63 // pred_check
          %p541 = pneg %p540
        $region90: #{tpu_custom_call.1} parent=63 // pred_check_branch
          %543 = sbr.rel (%p541) target = $region92
        $region91: #{tpu_custom_call.1} parent=63 // pred_region
          %v544 = vld [vmem:[%s469] sm:$0xf]
          %v545 = vld [vmem:[%s469 + $0x4] sm:$0xf]
          %v546 = vld [vmem:[%s5] sm:$0xf]
          %v547 = vld [vmem:[%s5 + $0x4] sm:$0xf]
          %v548 = vld [vmem:[%s5 + $0x8] sm:$0xf]
          %v549 = vld [vmem:[%s5 + $0xc] sm:$0xf]
          %v550 = vld [vmem:[%s6] sm:$0x1]
          %v552 = vlaneseq
          %v553 = vshrl.u32 %v552, 7
          %v554 = vsub.s32 0, %v553
          %v555 = vrot.slane %v550, %v554
          %v559 = vunpack.c.l.b16 %v544
          %v560 = vunpack.c.l.b16 %v545
          %v561 = vpack.c.b16 %v560, %v559
          %v566 = vunpack.c.l.b16 %v546
          %v567 = vunpack.c.l.b16 %v547
          %v568 = vunpack.c.l.b16 %v548
          %v569 = vunpack.c.l.b16 %v549
          %v570 = vpack.c.b16 %v567, %v566
          %v571 = vpack.c.b16 %v569, %v568
          %vm574 = vcmask 261120
          %v576 = vsel %vm574, %v561, 0
          %578 = vmatprep.subr.bf16.mxu0 0
          %579 = vmatpush1.bf16.msra.mxu0 %v570
          %580 = vmatprep.subr.bf16.mxu0 0
          %581 = vmatpush1.bf16.msra.mxu0 %v571
          %582 = vmatprep.subr.bf16.mxu0 0
          %583 = vmatpush1.bf16.msra.mxu0 0
          %584 = vmatprep.subr.bf16.mxu0 0
          %585 = vmatpush1.bf16.msra.mxu0 0
          %586 = vmatprep.subr.bf16.mxu0 0
          %587 = vmatpush1.bf16.msra.mxu0 0
          %588 = vmatprep.subr.bf16.mxu0 0
          %589 = vmatpush1.bf16.msra.mxu0 0
          %590 = vmatprep.subr.bf16.mxu0 0
          %591 = vmatpush1.bf16.msra.mxu0 0
          %592 = vmatprep.subr.bf16.mxu0 0
          %593 = vmatpush1.bf16.msra.mxu0 0
          %594 = vmatprep.subr.bf16.mxu0 0
          %595 = vmatpush1.bf16.msra.mxu0 0
          %596 = vmatprep.subr.bf16.mxu0 0
          %597 = vmatpush1.bf16.msra.mxu0 0
          %598 = vmatprep.subr.bf16.mxu0 0
          %599 = vmatpush1.bf16.msra.mxu0 0
          %600 = vmatprep.subr.bf16.mxu0 0
          %601 = vmatpush1.bf16.msra.mxu0 0
          %602 = vmatprep.subr.bf16.mxu0 0
          %603 = vmatpush1.bf16.msra.mxu0 0
          %604 = vmatprep.subr.bf16.mxu0 0
          %605 = vmatpush1.bf16.msra.mxu0 0
          %606 = vmatprep.subr.bf16.mxu0 0
          %607 = vmatpush1.bf16.msra.mxu0 0
          %608 = vmatprep.subr.bf16.mxu0 0
          %609 = vmatpush1.bf16.msra.mxu0 0
          %610 = vmatprep.mubr.bf16.mxu0 0
          %611 = vmatmul.mubr.bf16.gmra.mrb[0].mxu0 %v576
          %v612 = vpop.f32.mrb[0].mxu0
          %v613 = vadd.f32 %v555, %v612
          %v614 = vpop.f32.mrb[0].mxu0
          %v615 = vpop.f32.mrb[0].mxu0
          %v616 = vadd.f32 %v555, %v615
          %v617 = vpop.f32.mrb[0].mxu0
          %618 = vdwg.mxu0
          %v619 = vld [vmem:[%s478] sm:$0xf]
          %v620 = vld [vmem:[%s478 + $0x4] sm:$0xf]
          %v621 = vld [vmem:[#allocation12] sm:$0xf]
          %v622 = vld [vmem:[#allocation12 + $0x4] sm:$0xf]
          %v623 = vld [vmem:[#allocation12 + $0x8] sm:$0xf]
          %v624 = vld [vmem:[#allocation12 + $0xc] sm:$0xf]
          %v625 = vld [vmem:[#allocation13] sm:$0x1]
          %v627 = vlaneseq
          %v628 = vshrl.u32 %v627, 7
          %v629 = vsub.s32 0, %v628
          %v630 = vrot.slane %v625, %v629
          %v634 = vunpack.c.l.b16 %v619
          %v635 = vunpack.c.l.b16 %v620
          %v636 = vpack.c.b16 %v635, %v634
          %v641 = vunpack.c.l.b16 %v621
          %v642 = vunpack.c.l.b16 %v622
          %v643 = vunpack.c.l.b16 %v623
          %v644 = vunpack.c.l.b16 %v624
          %v645 = vpack.c.b16 %v642, %v641
          %v646 = vpack.c.b16 %v644, %v643
          %v650 = vsel %vm574, %v636, 0
          %652 = vmatprep.subr.bf16.mxu0 0
          %653 = vmatpush1.bf16.msra.mxu0 %v645
          %654 = vmatprep.subr.bf16.mxu0 0
          %655 = vmatpush1.bf16.msra.mxu0 %v646
          %656 = vmatprep.subr.bf16.mxu0 0
          %657 = vmatpush1.bf16.msra.mxu0 0
          %658 = vmatprep.subr.bf16.mxu0 0
          %659 = vmatpush1.bf16.msra.mxu0 0
          %660 = vmatprep.subr.bf16.mxu0 0
          %661 = vmatpush1.bf16.msra.mxu0 0
          %662 = vmatprep.subr.bf16.mxu0 0
          %663 = vmatpush1.bf16.msra.mxu0 0
          %664 = vmatprep.subr.bf16.mxu0 0
          %665 = vmatpush1.bf16.msra.mxu0 0
          %666 = vmatprep.subr.bf16.mxu0 0
          %667 = vmatpush1.bf16.msra.mxu0 0
          %668 = vmatprep.subr.bf16.mxu0 0
          %669 = vmatpush1.bf16.msra.mxu0 0
          %670 = vmatprep.subr.bf16.mxu0 0
          %671 = vmatpush1.bf16.msra.mxu0 0
          %672 = vmatprep.subr.bf16.mxu0 0
          %673 = vmatpush1.bf16.msra.mxu0 0
          %674 = vmatprep.subr.bf16.mxu0 0
          %675 = vmatpush1.bf16.msra.mxu0 0
          %676 = vmatprep.subr.bf16.mxu0 0
          %677 = vmatpush1.bf16.msra.mxu0 0
          %678 = vmatprep.subr.bf16.mxu0 0
          %679 = vmatpush1.bf16.msra.mxu0 0
          %680 = vmatprep.subr.bf16.mxu0 0
          %681 = vmatpush1.bf16.msra.mxu0 0
          %682 = vmatprep.subr.bf16.mxu0 0
          %683 = vmatpush1.bf16.msra.mxu0 0
          %684 = vmatprep.mubr.bf16.mxu0 0
          %685 = vmatmul.mubr.bf16.gmra.mrb[0].mxu0 %v650
          %v686 = vpop.f32.mrb[0].mxu0
          %v687 = vadd.f32 %v630, %v686
          %v688 = vpop.f32.mrb[0].mxu0
          %v689 = vpop.f32.mrb[0].mxu0
          %v690 = vadd.f32 %v630, %v689
          %v691 = vpop.f32.mrb[0].mxu0
          %692 = vdwg.mxu0
          %695 = vrot.lane.b32.xlu0 %v613, 120
          %v696 = vpop.permute.xlu0 %695
          %697 = vrot.lane.b32.xlu0 %v616, 120
          %v698 = vpop.permute.xlu0 %697
          %701 = vrot.lane.b32.xlu0 %v613, 112
          %v702 = vpop.permute.xlu0 %701
          %703 = vrot.lane.b32.xlu0 %v616, 112
          %v704 = vpop.permute.xlu0 %703
          %707 = vrot.lane.b32.xlu0 %v613, 104
          %v708 = vpop.permute.xlu0 %707
          %709 = vrot.lane.b32.xlu0 %v616, 104
          %v710 = vpop.permute.xlu0 %709
          %v713 = vpack.c.bf16 %v616, %v613
          %v714 = vpack.c.bf16 %v698, %v696
          %v715 = vpack.c.bf16 %v704, %v702
          %v716 = vpack.c.bf16 %v710, %v708
          %vm717 = vcmask 64512
          %718 = vst.msk [vmem:[#allocation2] sm:$0xff] %vm717, %v713
          %719 = vst.msk [vmem:[#allocation2 + $0x8] sm:$0xff] %vm717, %v714
          %720 = vst.msk [vmem:[#allocation2 + $0x10] sm:$0xff] %vm717, %v715
          %721 = vst.msk [vmem:[#allocation2 + $0x18] sm:$0xff] %vm717, %v716
          %724 = vrot.lane.b32.xlu0 %v687, 120
          %v725 = vpop.permute.xlu0 %724
          %726 = vrot.lane.b32.xlu0 %v690, 120
          %v727 = vpop.permute.xlu0 %726
          %730 = vrot.lane.b32.xlu0 %v687, 112
          %v731 = vpop.permute.xlu0 %730
          %732 = vrot.lane.b32.xlu0 %v690, 112
          %v733 = vpop.permute.xlu0 %732
          %736 = vrot.lane.b32.xlu0 %v687, 104
          %v737 = vpop.permute.xlu0 %736
          %738 = vrot.lane.b32.xlu0 %v690, 104
          %v739 = vpop.permute.xlu0 %738
          %v742 = vpack.c.bf16 %v690, %v687
          %v743 = vpack.c.bf16 %v727, %v725
          %v744 = vpack.c.bf16 %v733, %v731
          %v745 = vpack.c.bf16 %v739, %v737
          %746 = vst.msk [vmem:[#allocation3] sm:$0xff] %vm717, %v742
          %747 = vst.msk [vmem:[#allocation3 + $0x8] sm:$0xff] %vm717, %v743
          %748 = vst.msk [vmem:[#allocation3 + $0x10] sm:$0xff] %vm717, %v744
          %749 = vst.msk [vmem:[#allocation3 + $0x18] sm:$0xff] %vm717, %v745
        $region92: #{tpu_custom_call.1} parent=63 // pred_fallthru
          _
        %v750 = vld [vmem:[%s460] sm:$0xf]
        %v751 = vld [vmem:[#allocation10] sm:$0xf]
        %v752 = vld [vmem:[#allocation10 + $0x4] sm:$0xf]
        %v753 = vld [vmem:[#allocation10 + $0x8] sm:$0xf]
        %v754 = vld [vmem:[#allocation10 + $0xc] sm:$0xf]
        %v755 = vld [vmem:[%s4] sm:$0x1]
        %v757 = vlaneseq
        %v758 = vshrl.u32 %v757, 7
        %v759 = vsub.s32 0, %v758
        %v760 = vrot.slane %v755, %v759
        %v766 = vunpack.c.l.b16 %v751
        %v767 = vunpack.c.l.b16 %v752
        %v768 = vunpack.c.l.b16 %v753
        %v769 = vunpack.c.l.b16 %v754
        %v770 = vpack.c.b16 %v767, %v766
        %v771 = vpack.c.b16 %v769, %v768
        %vm774 = vcmask 261120
        %v776 = vsel %vm774, %v750, 0
        %778 = vmatprep.subr.bf16.mxu0 0
        %779 = vmatpush1.bf16.msra.mxu0 %v770
        %780 = vmatprep.subr.bf16.mxu0 0
        %781 = vmatpush1.bf16.msra.mxu0 %v771
        %782 = vmatprep.subr.bf16.mxu0 0
        %783 = vmatpush1.bf16.msra.mxu0 0
        %784 = vmatprep.subr.bf16.mxu0 0
        %785 = vmatpush1.bf16.msra.mxu0 0
        %786 = vmatprep.subr.bf16.mxu0 0
        %787 = vmatpush1.bf16.msra.mxu0 0
        %788 = vmatprep.subr.bf16.mxu0 0
        %789 = vmatpush1.bf16.msra.mxu0 0
        %790 = vmatprep.subr.bf16.mxu0 0
        %791 = vmatpush1.bf16.msra.mxu0 0
        %792 = vmatprep.subr.bf16.mxu0 0
        %793 = vmatpush1.bf16.msra.mxu0 0
        %794 = vmatprep.subr.bf16.mxu0 0
        %795 = vmatpush1.bf16.msra.mxu0 0
        %796 = vmatprep.subr.bf16.mxu0 0
        %797 = vmatpush1.bf16.msra.mxu0 0
        %798 = vmatprep.subr.bf16.mxu0 0
        %799 = vmatpush1.bf16.msra.mxu0 0
        %800 = vmatprep.subr.bf16.mxu0 0
        %801 = vmatpush1.bf16.msra.mxu0 0
        %802 = vmatprep.subr.bf16.mxu0 0
        %803 = vmatpush1.bf16.msra.mxu0 0
        %804 = vmatprep.subr.bf16.mxu0 0
        %805 = vmatpush1.bf16.msra.mxu0 0
        %806 = vmatprep.subr.bf16.mxu0 0
        %807 = vmatpush1.bf16.msra.mxu0 0
        %808 = vmatprep.subr.bf16.mxu0 0
        %809 = vmatpush1.bf16.msra.mxu0 0
        %810 = vmatprep.mubr.bf16.mxu0 0
        %811 = vmatmul.mubr.bf16.gmra.mrb[0].mxu0 %v776
        %v812 = vpop.f32.mrb[0].mxu0
        %v813 = vadd.f32 %v760, %v812
        %v814 = vpop.f32.mrb[0].mxu0
        %v815 = vpop.f32.mrb[0].mxu0
        %v816 = vpop.f32.mrb[0].mxu0
        %817 = vdwg.mxu0
        %v818 = vmul.f32 %v813, 0.35355338
        %820 = vrot.lane.b32.xlu0 %v818, 120
        %v821 = vpop.permute.xlu0 %820
        %823 = vrot.lane.b32.xlu0 %v818, 112
        %v824 = vpop.permute.xlu0 %823
        %826 = vrot.lane.b32.xlu0 %v818, 104
        %v827 = vpop.permute.xlu0 %826
        %v829 = vpack.c.bf16 %v818, %v818
        %v830 = vpack.c.bf16 %v821, %v821
        %v831 = vpack.c.bf16 %v824, %v824
        %v832 = vpack.c.bf16 %v827, %v827
        %v833 = vld [vmem:[#allocation2] sm:$0xff]
        %v834 = vld [vmem:[#allocation2 + $0x8] sm:$0xff]
        %v835 = vld [vmem:[#allocation2 + $0x10] sm:$0xff]
        %v836 = vld [vmem:[#allocation2 + $0x18] sm:$0xff]
        %v837 = vld [vmem:[#allocation3] sm:$0xff]
        %v838 = vld [vmem:[#allocation3 + $0x8] sm:$0xff]
        %v839 = vld [vmem:[#allocation3 + $0x10] sm:$0xff]
        %v840 = vld [vmem:[#allocation3 + $0x18] sm:$0xff]
        %vm841 = vcmask 64512
        %v843 = vsel %vm841, %v829, 0
        %v846 = vsel %vm841, %v833, 0
        %848 = vmatprep.subr.bf16.mxu0 0
        %849 = vmatpush1.bf16.xpose.msra.mxu0 %v846
        %850 = vmatprep.subr.bf16.mxu0 0
        %851 = vmatpush1.bf16.xpose.msra.mxu0 0
        %852 = vmatprep.subr.bf16.mxu0 0
        %853 = vmatpush1.bf16.xpose.msra.mxu0 0
        %854 = vmatprep.subr.bf16.mxu0 0
        %855 = vmatpush1.bf16.xpose.msra.mxu0 0
        %856 = vmatprep.subr.bf16.mxu0 0
        %857 = vmatpush1.bf16.xpose.msra.mxu0 0
        %858 = vmatprep.subr.bf16.mxu0 0
        %859 = vmatpush1.bf16.xpose.msra.mxu0 0
        %860 = vmatprep.subr.bf16.mxu0 0
        %861 = vmatpush1.bf16.xpose.msra.mxu0 0
        %862 = vmatprep.subr.bf16.mxu0 0
        %863 = vmatpush1.bf16.xpose.msra.mxu0 0
        %864 = vmatprep.subr.bf16.mxu0 0
        %865 = vmatpush1.bf16.xpose.msra.mxu0 0
        %866 = vmatprep.subr.bf16.mxu0 0
        %867 = vmatpush1.bf16.xpose.msra.mxu0 0
        %868 = vmatprep.subr.bf16.mxu0 0
        %869 = vmatpush1.bf16.xpose.msra.mxu0 0
        %870 = vmatprep.subr.bf16.mxu0 0
        %871 = vmatpush1.bf16.xpose.msra.mxu0 0
        %872 = vmatprep.subr.bf16.mxu0 0
        %873 = vmatpush1.bf16.xpose.msra.mxu0 0
        %874 = vmatprep.subr.bf16.mxu0 0
        %875 = vmatpush1.bf16.xpose.msra.mxu0 0
        %876 = vmatprep.subr.bf16.mxu0 0
        %877 = vmatpush1.bf16.xpose.msra.mxu0 0
        %878 = vmatprep.subr.bf16.mxu0 0
        %879 = vmatpush1.bf16.xpose.msra.mxu0 0
        %880 = vmatprep.mubr.bf16.mxu0 0
        %881 = vmatmul.mubr.bf16.gmra.mrb[0].mxu0 %v843
        %v882 = vpop.f32.mrb[0].mxu0
        %v883 = vadd.f32 0.0, %v882
        %v884 = vpop.f32.mrb[0].mxu0
        %v885 = vpop.f32.mrb[0].mxu0
        %v886 = vpop.f32.mrb[0].mxu0
        %887 = vdwg.mxu0
        %v889 = vsel %vm841, %v830, 0
        %v892 = vsel %vm841, %v834, 0
        %894 = vmatprep.subr.bf16.mxu0 0
        %895 = vmatpush1.bf16.xpose.msra.mxu0 %v892
        %896 = vmatprep.subr.bf16.mxu0 0
        %897 = vmatpush1.bf16.xpose.msra.mxu0 0
        %898 = vmatprep.subr.bf16.mxu0 0
        %899 = vmatpush1.bf16.xpose.msra.mxu0 0
        %900 = vmatprep.subr.bf16.mxu0 0
        %901 = vmatpush1.bf16.xpose.msra.mxu0 0
        %902 = vmatprep.subr.bf16.mxu0 0
        %903 = vmatpush1.bf16.xpose.msra.mxu0 0
        %904 = vmatprep.subr.bf16.mxu0 0
        %905 = vmatpush1.bf16.xpose.msra.mxu0 0
        %906 = vmatprep.subr.bf16.mxu0 0
        %907 = vmatpush1.bf16.xpose.msra.mxu0 0
        %908 = vmatprep.subr.bf16.mxu0 0
        %909 = vmatpush1.bf16.xpose.msra.mxu0 0
        %910 = vmatprep.subr.bf16.mxu0 0
        %911 = vmatpush1.bf16.xpose.msra.mxu0 0
        %912 = vmatprep.subr.bf16.mxu0 0
        %913 = vmatpush1.bf16.xpose.msra.mxu0 0
        %914 = vmatprep.subr.bf16.mxu0 0
        %915 = vmatpush1.bf16.xpose.msra.mxu0 0
        %916 = vmatprep.subr.bf16.mxu0 0
        %917 = vmatpush1.bf16.xpose.msra.mxu0 0
        %918 = vmatprep.subr.bf16.mxu0 0
        %919 = vmatpush1.bf16.xpose.msra.mxu0 0
        %920 = vmatprep.subr.bf16.mxu0 0
        %921 = vmatpush1.bf16.xpose.msra.mxu0 0
        %922 = vmatprep.subr.bf16.mxu0 0
        %923 = vmatpush1.bf16.xpose.msra.mxu0 0
        %924 = vmatprep.subr.bf16.mxu0 0
        %925 = vmatpush1.bf16.xpose.msra.mxu0 0
        %926 = vmatprep.mubr.bf16.mxu0 0
        %927 = vmatmul.mubr.bf16.gmra.mrb[0].mxu0 %v889
        %v928 = vpop.f32.mrb[0].mxu0
        %v929 = vadd.f32 0.0, %v928
        %v930 = vpop.f32.mrb[0].mxu0
        %v931 = vpop.f32.mrb[0].mxu0
        %v932 = vpop.f32.mrb[0].mxu0
        %933 = vdwg.mxu0
        %v935 = vsel %vm841, %v831, 0
        %v938 = vsel %vm841, %v835, 0
        %940 = vmatprep.subr.bf16.mxu0 0
        %941 = vmatpush1.bf16.xpose.msra.mxu0 %v938
        %942 = vmatprep.subr.bf16.mxu0 0
        %943 = vmatpush1.bf16.xpose.msra.mxu0 0
        %944 = vmatprep.subr.bf16.mxu0 0
        %945 = vmatpush1.bf16.xpose.msra.mxu0 0
        %946 = vmatprep.subr.bf16.mxu0 0
        %947 = vmatpush1.bf16.xpose.msra.mxu0 0
        %948 = vmatprep.subr.bf16.mxu0 0
        %949 = vmatpush1.bf16.xpose.msra.mxu0 0
        %950 = vmatprep.subr.bf16.mxu0 0
        %951 = vmatpush1.bf16.xpose.msra.mxu0 0
        %952 = vmatprep.subr.bf16.mxu0 0
        %953 = vmatpush1.bf16.xpose.msra.mxu0 0
        %954 = vmatprep.subr.bf16.mxu0 0
        %955 = vmatpush1.bf16.xpose.msra.mxu0 0
        %956 = vmatprep.subr.bf16.mxu0 0
        %957 = vmatpush1.bf16.xpose.msra.mxu0 0
        %958 = vmatprep.subr.bf16.mxu0 0
        %959 = vmatpush1.bf16.xpose.msra.mxu0 0
        %960 = vmatprep.subr.bf16.mxu0 0
        %961 = vmatpush1.bf16.xpose.msra.mxu0 0
        %962 = vmatprep.subr.bf16.mxu0 0
        %963 = vmatpush1.bf16.xpose.msra.mxu0 0
        %964 = vmatprep.subr.bf16.mxu0 0
        %965 = vmatpush1.bf16.xpose.msra.mxu0 0
        %966 = vmatprep.subr.bf16.mxu0 0
        %967 = vmatpush1.bf16.xpose.msra.mxu0 0
        %968 = vmatprep.subr.bf16.mxu0 0
        %969 = vmatpush1.bf16.xpose.msra.mxu0 0
        %970 = vmatprep.subr.bf16.mxu0 0
        %971 = vmatpush1.bf16.xpose.msra.mxu0 0
        %972 = vmatprep.mubr.bf16.mxu0 0
        %973 = vmatmul.mubr.bf16.gmra.mrb[0].mxu0 %v935
        %v974 = vpop.f32.mrb[0].mxu0
        %v975 = vadd.f32 0.0, %v974
        %v976 = vpop.f32.mrb[0].mxu0
        %v977 = vpop.f32.mrb[0].mxu0
        %v978 = vpop.f32.mrb[0].mxu0
        %979 = vdwg.mxu0
        %v981 = vsel %vm841, %v832, 0
        %v984 = vsel %vm841, %v836, 0
        %986 = vmatprep.subr.bf16.mxu0 0
        %987 = vmatpush1.bf16.xpose.msra.mxu0 %v984
        %988 = vmatprep.subr.bf16.mxu0 0
        %989 = vmatpush1.bf16.xpose.msra.mxu0 0
        %990 = vmatprep.subr.bf16.mxu0 0
        %991 = vmatpush1.bf16.xpose.msra.mxu0 0
        %992 = vmatprep.subr.bf16.mxu0 0
        %993 = vmatpush1.bf16.xpose.msra.mxu0 0
        %994 = vmatprep.subr.bf16.mxu0 0
        %995 = vmatpush1.bf16.xpose.msra.mxu0 0
        %996 = vmatprep.subr.bf16.mxu0 0
        %997 = vmatpush1.bf16.xpose.msra.mxu0 0
        %998 = vmatprep.subr.bf16.mxu0 0
        %999 = vmatpush1.bf16.xpose.msra.mxu0 0
        %1000 = vmatprep.subr.bf16.mxu0 0
        %1001 = vmatpush1.bf16.xpose.msra.mxu0 0
        %1002 = vmatprep.subr.bf16.mxu0 0
        %1003 = vmatpush1.bf16.xpose.msra.mxu0 0
        %1004 = vmatprep.subr.bf16.mxu0 0
        %1005 = vmatpush1.bf16.xpose.msra.mxu0 0
        %1006 = vmatprep.subr.bf16.mxu0 0
        %1007 = vmatpush1.bf16.xpose.msra.mxu0 0
        %1008 = vmatprep.subr.bf16.mxu0 0
        %1009 = vmatpush1.bf16.xpose.msra.mxu0 0
        %1010 = vmatprep.subr.bf16.mxu0 0
        %1011 = vmatpush1.bf16.xpose.msra.mxu0 0
        %1012 = vmatprep.subr.bf16.mxu0 0
        %1013 = vmatpush1.bf16.xpose.msra.mxu0 0
        %1014 = vmatprep.subr.bf16.mxu0 0
        %1015 = vmatpush1.bf16.xpose.msra.mxu0 0
        %1016 = vmatprep.subr.bf16.mxu0 0
        %1017 = vmatpush1.bf16.xpose.msra.mxu0 0
        %1018 = vmatprep.mubr.bf16.mxu0 0
        %1019 = vmatmul.mubr.bf16.gmra.mrb[0].mxu0 %v981
        %v1020 = vpop.f32.mrb[0].mxu0
        %v1021 = vadd.f32 0.0, %v1020
        %v1022 = vpop.f32.mrb[0].mxu0
        %v1023 = vpop.f32.mrb[0].mxu0
        %v1024 = vpop.f32.mrb[0].mxu0
        %1025 = vdwg.mxu0
        %vm1026 = vcmask 130048
        %v1027 = vsel %vm1026, %v883, -inf
        %1028 = vmax.xlane.f32.xlu0 %v1027
        %v1029 = vpop.xlane.xlu0 %1028
        %v1030 = vsel %vm1026, %v929, -inf
        %1031 = vmax.xlane.f32.xlu0 %v1030
        %v1032 = vpop.xlane.xlu0 %1031
        %v1033 = vsel %vm1026, %v975, -inf
        %1034 = vmax.xlane.f32.xlu0 %v1033
        %v1035 = vpop.xlane.xlu0 %1034
        %v1036 = vsel %vm1026, %v1021, -inf
        %1037 = vmax.xlane.f32.xlu0 %v1036
        %v1038 = vpop.xlane.xlu0 %1037
        %v1039 = vsub.f32 %v883, %v1029
        %v1040 = vsub.f32 %v929, %v1032
        %v1041 = vsub.f32 %v975, %v1035
        %v1042 = vsub.f32 %v1021, %v1038
        %v1043 = vmul.f32 %v1039, 1.442695
        %v1044 = vpow.pop %v1043
        %v1045 = vmul.f32 %v1040, 1.442695
        %v1046 = vpow.pop %v1045
        %v1047 = vmul.f32 %v1041, 1.442695
        %v1048 = vpow.pop %v1047
        %v1049 = vmul.f32 %v1042, 1.442695
        %v1050 = vpow.pop %v1049
        %v1051 = vsel %vm1026, %v1044, 0.0
        %1052 = vadd.xlane.f32.xlu0 %v1051
        %v1053 = vpop.xlane.xlu0 %1052
        %v1054 = vsel %vm1026, %v1046, 0.0
        %1055 = vadd.xlane.f32.xlu0 %v1054
        %v1056 = vpop.xlane.xlu0 %1055
        %v1057 = vsel %vm1026, %v1048, 0.0
        %1058 = vadd.xlane.f32.xlu0 %v1057
        %v1059 = vpop.xlane.xlu0 %1058
        %v1060 = vsel %vm1026, %v1050, 0.0
        %1061 = vadd.xlane.f32.xlu0 %v1060
        %v1062 = vpop.xlane.xlu0 %1061
        %v1063 = vpack.c.bf16 %v1044, %v1044
        %v1064 = vpack.c.bf16 %v1046, %v1046
        %v1065 = vpack.c.bf16 %v1048, %v1048
        %v1066 = vpack.c.bf16 %v1050, %v1050
        %v1068 = vsel %vm1026, %v1063, 0
        %1070 = vmatprep.subr.bf16.mxu0 0
        %1071 = vmatpush1.bf16.msra.mxu0 %v837
        %1072 = vmatprep.subr.bf16.mxu0 0
        %1073 = vmatpush1.bf16.msra.mxu0 0
        %1074 = vmatprep.subr.bf16.mxu0 0
        %1075 = vmatpush1.bf16.msra.mxu0 0
        %1076 = vmatprep.subr.bf16.mxu0 0
        %1077 = vmatpush1.bf16.msra.mxu0 0
        %1078 = vmatprep.subr.bf16.mxu0 0
        %1079 = vmatpush1.bf16.msra.mxu0 0
        %1080 = vmatprep.subr.bf16.mxu0 0
        %1081 = vmatpush1.bf16.msra.mxu0 0
        %1082 = vmatprep.subr.bf16.mxu0 0
        %1083 = vmatpush1.bf16.msra.mxu0 0
        %1084 = vmatprep.subr.bf16.mxu0 0
        %1085 = vmatpush1.bf16.msra.mxu0 0
        %1086 = vmatprep.subr.bf16.mxu0 0
        %1087 = vmatpush1.bf16.msra.mxu0 0
        %1088 = vmatprep.subr.bf16.mxu0 0
        %1089 = vmatpush1.bf16.msra.mxu0 0
        %1090 = vmatprep.subr.bf16.mxu0 0
        %1091 = vmatpush1.bf16.msra.mxu0 0
        %1092 = vmatprep.subr.bf16.mxu0 0
        %1093 = vmatpush1.bf16.msra.mxu0 0
        %1094 = vmatprep.subr.bf16.mxu0 0
        %1095 = vmatpush1.bf16.msra.mxu0 0
        %1096 = vmatprep.subr.bf16.mxu0 0
        %1097 = vmatpush1.bf16.msra.mxu0 0
        %1098 = vmatprep.subr.bf16.mxu0 0
        %1099 = vmatpush1.bf16.msra.mxu0 0
        %1100 = vmatprep.subr.bf16.mxu0 0
        %1101 = vmatpush1.bf16.msra.mxu0 0
        %1102 = vmatprep.mubr.bf16.mxu0 0
        %1103 = vmatmul.mubr.bf16.gmra.mrb[0].mxu0 %v1068
        %v1104 = vpop.f32.mrb[0].mxu0
        %v1105 = vadd.f32 0.0, %v1104
        %v1106 = vpop.f32.mrb[0].mxu0
        %v1107 = vpop.f32.mrb[0].mxu0
        %v1108 = vpop.f32.mrb[0].mxu0
        %1109 = vdwg.mxu0
        %v1111 = vsel %vm1026, %v1064, 0
        %1113 = vmatprep.subr.bf16.mxu0 0
        %1114 = vmatpush1.bf16.msra.mxu0 %v838
        %1115 = vmatprep.subr.bf16.mxu0 0
        %1116 = vmatpush1.bf16.msra.mxu0 0
        %1117 = vmatprep.subr.bf16.mxu0 0
        %1118 = vmatpush1.bf16.msra.mxu0 0
        %1119 = vmatprep.subr.bf16.mxu0 0
        %1120 = vmatpush1.bf16.msra.mxu0 0
        %1121 = vmatprep.subr.bf16.mxu0 0
        %1122 = vmatpush1.bf16.msra.mxu0 0
        %1123 = vmatprep.subr.bf16.mxu0 0
        %1124 = vmatpush1.bf16.msra.mxu0 0
        %1125 = vmatprep.subr.bf16.mxu0 0
        %1126 = vmatpush1.bf16.msra.mxu0 0
        %1127 = vmatprep.subr.bf16.mxu0 0
        %1128 = vmatpush1.bf16.msra.mxu0 0
        %1129 = vmatprep.subr.bf16.mxu0 0
        %1130 = vmatpush1.bf16.msra.mxu0 0
        %1131 = vmatprep.subr.bf16.mxu0 0
        %1132 = vmatpush1.bf16.msra.mxu0 0
        %1133 = vmatprep.subr.bf16.mxu0 0
        %1134 = vmatpush1.bf16.msra.mxu0 0
        %1135 = vmatprep.subr.bf16.mxu0 0
        %1136 = vmatpush1.bf16.msra.mxu0 0
        %1137 = vmatprep.subr.bf16.mxu0 0
        %1138 = vmatpush1.bf16.msra.mxu0 0
        %1139 = vmatprep.subr.bf16.mxu0 0
        %1140 = vmatpush1.bf16.msra.mxu0 0
        %1141 = vmatprep.subr.bf16.mxu0 0
        %1142 = vmatpush1.bf16.msra.mxu0 0
        %1143 = vmatprep.subr.bf16.mxu0 0
        %1144 = vmatpush1.bf16.msra.mxu0 0
        %1145 = vmatprep.mubr.bf16.mxu0 0
        %1146 = vmatmul.mubr.bf16.gmra.mrb[0].mxu0 %v1111
        %v1147 = vpop.f32.mrb[0].mxu0
        %v1148 = vadd.f32 0.0, %v1147
        %v1149 = vpop.f32.mrb[0].mxu0
        %v1150 = vpop.f32.mrb[0].mxu0
        %v1151 = vpop.f32.mrb[0].mxu0
        %1152 = vdwg.mxu0
        %v1154 = vsel %vm1026, %v1065, 0
        %1156 = vmatprep.subr.bf16.mxu0 0
        %1157 = vmatpush1.bf16.msra.mxu0 %v839
        %1158 = vmatprep.subr.bf16.mxu0 0
        %1159 = vmatpush1.bf16.msra.mxu0 0
        %1160 = vmatprep.subr.bf16.mxu0 0
        %1161 = vmatpush1.bf16.msra.mxu0 0
        %1162 = vmatprep.subr.bf16.mxu0 0
        %1163 = vmatpush1.bf16.msra.mxu0 0
        %1164 = vmatprep.subr.bf16.mxu0 0
        %1165 = vmatpush1.bf16.msra.mxu0 0
        %1166 = vmatprep.subr.bf16.mxu0 0
        %1167 = vmatpush1.bf16.msra.mxu0 0
        %1168 = vmatprep.subr.bf16.mxu0 0
        %1169 = vmatpush1.bf16.msra.mxu0 0
        %1170 = vmatprep.subr.bf16.mxu0 0
        %1171 = vmatpush1.bf16.msra.mxu0 0
        %1172 = vmatprep.subr.bf16.mxu0 0
        %1173 = vmatpush1.bf16.msra.mxu0 0
        %1174 = vmatprep.subr.bf16.mxu0 0
        %1175 = vmatpush1.bf16.msra.mxu0 0
        %1176 = vmatprep.subr.bf16.mxu0 0
        %1177 = vmatpush1.bf16.msra.mxu0 0
        %1178 = vmatprep.subr.bf16.mxu0 0
        %1179 = vmatpush1.bf16.msra.mxu0 0
        %1180 = vmatprep.subr.bf16.mxu0 0
        %1181 = vmatpush1.bf16.msra.mxu0 0
        %1182 = vmatprep.subr.bf16.mxu0 0
        %1183 = vmatpush1.bf16.msra.mxu0 0
        %1184 = vmatprep.subr.bf16.mxu0 0
        %1185 = vmatpush1.bf16.msra.mxu0 0
        %1186 = vmatprep.subr.bf16.mxu0 0
        %1187 = vmatpush1.bf16.msra.mxu0 0
        %1188 = vmatprep.mubr.bf16.mxu0 0
        %1189 = vmatmul.mubr.bf16.gmra.mrb[0].mxu0 %v1154
        %v1190 = vpop.f32.mrb[0].mxu0
        %v1191 = vadd.f32 0.0, %v1190
        %v1192 = vpop.f32.mrb[0].mxu0
        %v1193 = vpop.f32.mrb[0].mxu0
        %v1194 = vpop.f32.mrb[0].mxu0
        %1195 = vdwg.mxu0
        %v1197 = vsel %vm1026, %v1066, 0
        %1199 = vmatprep.subr.bf16.mxu0 0
        %1200 = vmatpush1.bf16.msra.mxu0 %v840
        %1201 = vmatprep.subr.bf16.mxu0 0
        %1202 = vmatpush1.bf16.msra.mxu0 0
        %1203 = vmatprep.subr.bf16.mxu0 0
        %1204 = vmatpush1.bf16.msra.mxu0 0
        %1205 = vmatprep.subr.bf16.mxu0 0
        %1206 = vmatpush1.bf16.msra.mxu0 0
        %1207 = vmatprep.subr.bf16.mxu0 0
        %1208 = vmatpush1.bf16.msra.mxu0 0
        %1209 = vmatprep.subr.bf16.mxu0 0
        %1210 = vmatpush1.bf16.msra.mxu0 0
        %1211 = vmatprep.subr.bf16.mxu0 0
        %1212 = vmatpush1.bf16.msra.mxu0 0
        %1213 = vmatprep.subr.bf16.mxu0 0
        %1214 = vmatpush1.bf16.msra.mxu0 0
        %1215 = vmatprep.subr.bf16.mxu0 0
        %1216 = vmatpush1.bf16.msra.mxu0 0
        %1217 = vmatprep.subr.bf16.mxu0 0
        %1218 = vmatpush1.bf16.msra.mxu0 0
        %1219 = vmatprep.subr.bf16.mxu0 0
        %1220 = vmatpush1.bf16.msra.mxu0 0
        %1221 = vmatprep.subr.bf16.mxu0 0
        %1222 = vmatpush1.bf16.msra.mxu0 0
        %1223 = vmatprep.subr.bf16.mxu0 0
        %1224 = vmatpush1.bf16.msra.mxu0 0
        %1225 = vmatprep.subr.bf16.mxu0 0
        %1226 = vmatpush1.bf16.msra.mxu0 0
        %1227 = vmatprep.subr.bf16.mxu0 0
        %1228 = vmatpush1.bf16.msra.mxu0 0
        %1229 = vmatprep.subr.bf16.mxu0 0
        %1230 = vmatpush1.bf16.msra.mxu0 0
        %1231 = vmatprep.mubr.bf16.mxu0 0
        %1232 = vmatmul.mubr.bf16.gmra.mrb[0].mxu0 %v1197
        %v1233 = vpop.f32.mrb[0].mxu0
        %v1234 = vadd.f32 0.0, %v1233
        %v1235 = vpop.f32.mrb[0].mxu0
        %v1236 = vpop.f32.mrb[0].mxu0
        %v1237 = vpop.f32.mrb[0].mxu0
        %1238 = vdwg.mxu0
        %v1239 = vrcp.pop %v1053
        %v1240 = vrcp.pop %v1056
        %v1241 = vrcp.pop %v1059
        %v1242 = vrcp.pop %v1062
        %v1243 = vmul.f32 %v1105, %v1239
        %v1244 = vmul.f32 %v1148, %v1240
        %v1245 = vmul.f32 %v1191, %v1241
        %v1246 = vmul.f32 %v1234, %v1242
        %v1247 = vpack.c.bf16 %v1243, %v1243
        %v1248 = vpack.c.bf16 %v1244, %v1244
        %v1249 = vpack.c.bf16 %v1245, %v1245
        %v1250 = vpack.c.bf16 %v1246, %v1246
        %1252 = vrot.lane.b32.xlu0 %v1248, 8
        %v1253 = vpop.permute.xlu0 %1252
        %1255 = vrot.lane.b32.xlu0 %v1249, 16
        %v1256 = vpop.permute.xlu0 %1255
        %1258 = vrot.lane.b32.xlu0 %v1250, 24
        %v1259 = vpop.permute.xlu0 %1258
        %v1262 = vsel %vm841, %v1247, %v1253
        %v1264 = vsel %vm1026, %v1262, %v1256
        %vm1265 = vcmask 195584
        %v1267 = vsel %vm1265, %v1264, %v1259
        %v1268 = vld [vmem:[%s9] sm:$0xf]
        %v1269 = vld [vmem:[%s9 + $0x4] sm:$0xf]
        %v1270 = vld [vmem:[%s9 + $0x8] sm:$0xf]
        %v1271 = vld [vmem:[%s9 + $0xc] sm:$0xf]
        %v1272 = vld [vmem:[%s10] sm:$0x1]
        %v1274 = vlaneseq
        %v1275 = vshrl.u32 %v1274, 7
        %v1276 = vsub.s32 0, %v1275
        %v1277 = vrot.slane %v1272, %v1276
        %v1283 = vunpack.c.l.b16 %v1268
        %v1284 = vunpack.c.l.b16 %v1269
        %v1285 = vunpack.c.l.b16 %v1270
        %v1286 = vunpack.c.l.b16 %v1271
        %v1287 = vpack.c.b16 %v1284, %v1283
        %v1288 = vpack.c.b16 %v1286, %v1285
        %v1291 = vsel %vm774, %v1267, 0
        %1293 = vmatprep.subr.bf16.mxu0 0
        %1294 = vmatpush1.bf16.msra.mxu0 %v1287
        %1295 = vmatprep.subr.bf16.mxu0 0
        %1296 = vmatpush1.bf16.msra.mxu0 %v1288
        %1297 = vmatprep.subr.bf16.mxu0 0
        %1298 = vmatpush1.bf16.msra.mxu0 0
        %1299 = vmatprep.subr.bf16.mxu0 0
        %1300 = vmatpush1.bf16.msra.mxu0 0
        %1301 = vmatprep.subr.bf16.mxu0 0
        %1302 = vmatpush1.bf16.msra.mxu0 0
        %1303 = vmatprep.subr.bf16.mxu0 0
        %1304 = vmatpush1.bf16.msra.mxu0 0
        %1305 = vmatprep.subr.bf16.mxu0 0
        %1306 = vmatpush1.bf16.msra.mxu0 0
        %1307 = vmatprep.subr.bf16.mxu0 0
        %1308 = vmatpush1.bf16.msra.mxu0 0
        %1309 = vmatprep.subr.bf16.mxu0 0
        %1310 = vmatpush1.bf16.msra.mxu0 0
        %1311 = vmatprep.subr.bf16.mxu0 0
        %1312 = vmatpush1.bf16.msra.mxu0 0
        %1313 = vmatprep.subr.bf16.mxu0 0
        %1314 = vmatpush1.bf16.msra.mxu0 0
        %1315 = vmatprep.subr.bf16.mxu0 0
        %1316 = vmatpush1.bf16.msra.mxu0 0
        %1317 = vmatprep.subr.bf16.mxu0 0
        %1318 = vmatpush1.bf16.msra.mxu0 0
        %1319 = vmatprep.subr.bf16.mxu0 0
        %1320 = vmatpush1.bf16.msra.mxu0 0
        %1321 = vmatprep.subr.bf16.mxu0 0
        %1322 = vmatpush1.bf16.msra.mxu0 0
        %1323 = vmatprep.subr.bf16.mxu0 0
        %1324 = vmatpush1.bf16.msra.mxu0 0
        %1325 = vmatprep.mubr.bf16.mxu0 0
        %1326 = vmatmul.mubr.bf16.gmra.mrb[0].mxu0 %v1291
        %v1327 = vpop.f32.mrb[0].mxu0
        %v1328 = vadd.f32 %v1277, %v1327
        %v1329 = vpop.f32.mrb[0].mxu0
        %v1330 = vpop.f32.mrb[0].mxu0
        %v1331 = vpop.f32.mrb[0].mxu0
        %1332 = vdwg.mxu0
        %1333 = vst.msk [vmem:[%s538] sm:$0xff] %vm774, %v1328
        %s1334 = sand.u32 %s303, 1
        %s1335 = scalar_lea.sflag [#allocation6], %s1334
        %s1336 = sand.u32 %s303, 1
        %s1337 = smul.addr %s1336, 8
        %s1338 = scalar_lea.vmem [#allocation15], %s1337
        // Predicated region
        $region93: #{tpu_custom_call.1} parent=63 // pred_check
          %p1339 = pneg %p313
        $region94: #{tpu_custom_call.1} parent=63 // pred_check_branch
          %1341 = sbr.rel (%p1339) target = $region96
        $region95: #{tpu_custom_call.1} parent=63 // pred_region
          %s1343 = ssub.s32 128, 128
          %1344 = vsyncadd %s1335, %s1343
          %s1345 = smul.addr %s37, 2
          %s1346 = sadd.s32 %s38, %s1345
          %s1347 = smul.addr %s1346, 128
          %s1348 = scalar_lea.hbm %s11, %s1347
          %s1350 = sshll.u32 %s1338, 4
          %s1351 = int_to_ptr.vmem [resolvable:$true] %s1350
          %1353 = dma.vmem_to_hbm [thread:$0]  %s1351, 128, %s1348, %s1335
        $region96: #{tpu_custom_call.1} parent=63 // pred_fallthru
          _
      $region64: #{tpu_custom_call.1} parent=5 // pred_fallthru
        _
      %p1354 = scmp.le.s32.totalorder 2, %s28
      // Predicated region
      $region97: #{tpu_custom_call.1} parent=5 // pred_check
        %p1355 = pneg %p1354
      $region98: #{tpu_custom_call.1} parent=5 // pred_check_branch
        %1357 = sbr.rel (%p1355) target = $region100
      $region99: #{tpu_custom_call.1} parent=5 // pred_region
        %s1358 = ssub.s32 %s28, 2
        // Predicated region
        $region101: #{tpu_custom_call.1} parent=99 // pred_check
          %p1359 = pneg %p319
        $region102: #{tpu_custom_call.1} parent=99 // pred_check_branch
          %1361 = sbr.rel (%p1359) target = $region104
        $region103: #{tpu_custom_call.1} parent=99 // pred_region
          %s1362 = sand.u32 %s304, 1
          %s1363 = scalar_lea.sflag [#allocation6], %s1362
          %s1364 = sand.u32 %s304, 1
          %s1365 = smul.addr %s1364, 8
          %s1366 = scalar_lea.vmem [#allocation15], %s1365
          %1367 = dma.done %s1363, 128
        $region104: #{tpu_custom_call.1} parent=99 // pred_fallthru
          _
      $region100: #{tpu_custom_call.1} parent=5 // pred_fallthru
        _
    $region6: #{tpu_custom_call.1} parent=1 // loop_footer
      %s32 = sadd.s32 1, %s28
    $region7: #{tpu_custom_call.1} parent=1 // loop_footer_branch
      %27 = sbr.rel target = $region3
    $region8: #{tpu_custom_call.1} parent=1 // loop_exit
      _
    %1368 = vsyncpa [#allocation5], 1
    %s1369 = scalar_lea.sflag [#allocation5], 1
    %1370 = vsyncpa %s1369, 1
    %1371 = vsyncpa [#allocation8], 1
    %s1372 = scalar_lea.sflag [#allocation8], 1
    %1373 = vsyncpa %s1372, 1
    %1374 = vsyncpa [#allocation11], 1
    %1375 = vsyncpa [#allocation14], 1
    %1376 = vsyncpa [#allocation6], 1
    %s1377 = scalar_lea.sflag [#allocation6], 1
    %1378 = vsyncpa %s1377, 1

</llo_original>
